<compile_context>
chip_gen: v7x
topology: tpu7x:2x2x1
jax: 0.10.0
libtpu: 0.0.40
codegen_flags: <defaults>
</compile_context>

<pallas_src>
import functools

import jax
import jax.numpy as jnp
from jax.experimental import pallas as pl
from jax.experimental.pallas import tpu as pltpu


# ----------------------------------------------------------------------------
# Fused kernel: all LSTM layers (wavefront-interleaved) + final linear.
# refs layout: x, (w_ih_t, w_hh_t, bias) * num_layers, w_lin, out
# ----------------------------------------------------------------------------
def _fused_lstm_kernel(num_layers, hidden_dim, *refs):
    x_ref = refs[0]
    wlin_ref = refs[1 + 3 * num_layers]   # (out_dim, H), f32
    out_ref = refs[2 + 3 * num_layers]    # (B, out_dim)

    T, B, _ = x_ref.shape
    H = hidden_dim
    L = num_layers
    f32 = jnp.float32
    bf16 = jnp.bfloat16

    # Weights loaded once; they stay resident in vregs/VMEM.
    wih = [refs[1 + 3 * l][...] for l in range(L)]    # (Din_l, 4H) bf16, 0.5-folded
    whh = [refs[2 + 3 * l][...] for l in range(L)]    # (H, 4H)     bf16, 0.5-folded
    bias = [refs[3 + 3 * l][...] for l in range(L)]   # (1, 4H)     f32,  0.5-folded

    # Layer-0 input projections: independent of the recurrence, issued eagerly
    # so the scheduler hides them under the recurrent dependency chain.
    gx = [[None] * T for _ in range(L)]
    for t in range(T):
        gx[0][t] = (
            jnp.dot(x_ref[t].astype(bf16), wih[0], preferred_element_type=f32)
            + bias[0]
        )  # (B, 4H) f32

    h_f32 = [jnp.zeros((B, H), f32) for _ in range(L)]
    h_b = [jnp.zeros((B, H), bf16) for _ in range(L)]
    c = [jnp.zeros((B, H), f32) for _ in range(L)]

    # Diagonal wavefront: global step s, layer l works on local time t = s - l.
    # Fully unrolled (T=8, L=2 static) -> one basic block, LLO scheduler
    # overlaps the per-layer chains; critical path ~ T + L - 1 steps.
    for s in range(T + L - 1):
        for l in range(L):
            t = s - l
            if not (0 <= t < T):
                continue

            # Only h @ W_hh sits on this layer's serial chain; the input
            # projection gx[l][t] was produced on a parallel chain.
            gates = gx[l][t] + jnp.dot(
                h_b[l], whh[l], preferred_element_type=f32
            )  # (B, 4H) f32

            # Tanh-only gates: i/f/o columns were pre-scaled by 0.5, so
            # sigmoid(z) == 0.5 * tanh(z/2) + 0.5.  PyTorch gate order [i,f,g,o].
            th = jnp.tanh(gates)          # one full-vreg EUP push
            sg = 0.5 * th + 0.5           # VPU only
            i_g = sg[:, 0 * H:1 * H]
            f_g = sg[:, 1 * H:2 * H]
            g_g = th[:, 2 * H:3 * H]
            o_g = sg[:, 3 * H:4 * H]

            c[l] = f_g * c[l] + i_g * g_g
            h_new = o_g * jnp.tanh(c[l])  # second EUP push
            h_f32[l] = h_new
            hb = h_new.astype(bf16)
            h_b[l] = hb

            # Feed the next layer immediately (wavefront): its step-t input
            # projection is off that layer's critical path.
            if l + 1 < L:
                gx[l + 1][t] = (
                    jnp.dot(hb, wih[l + 1], preferred_element_type=f32)
                    + bias[l + 1]
                )
            # TODO(synk): nn.LSTM inter-layer dropout not applied (dropout=0.0
            # in this config, so semantics match exactly).

    # Final projection on out[-1] of the last layer.
    h_last = h_f32[L - 1]                 # (B, H) f32
    out_dim = wlin_ref.shape[0]
    if out_dim == 1:
        # VPU multiply + XLU lane reduction instead of an N=1 MXU matmul.
        out_ref[...] = jnp.sum(
            h_last * wlin_ref[...], axis=1, keepdims=True
        ).astype(out_ref.dtype)
    else:
        out_ref[...] = jax.lax.dot_general(
            h_last, wlin_ref[...],
            dimension_numbers=(((1,), (1,)), ((), ())),
            preferred_element_type=f32,
        ).astype(out_ref.dtype)


# ----------------------------------------------------------------------------
# Wrapper: single pallas_call, all operands as whole-array VMEM blocks.
# ----------------------------------------------------------------------------
@functools.partial(jax.jit, static_argnames=("num_layers",))
def model_forward(x, kparams, num_layers):
    """x: (T, B, input_dim) float32. Returns (B, output_dim) float32."""
    T, B, _ = x.shape
    H = kparams["lstm_l0"][1].shape[0]        # w_hh_t is (H, 4H)
    out_dim = kparams["linear"].shape[0]      # (out_dim, H)

    flat_inputs = [x]
    for layer in range(num_layers):
        flat_inputs.extend(kparams[f"lstm_l{layer}"])
    flat_inputs.append(kparams["linear"])

    kernel = functools.partial(_fused_lstm_kernel, num_layers, H)

    return pl.pallas_call(
        kernel,
        out_shape=jax.ShapeDtypeStruct((B, out_dim), jnp.float32),
        in_specs=[
            pl.BlockSpec(memory_space=pltpu.MemorySpace.VMEM)
            for _ in flat_inputs
        ],
        out_specs=pl.BlockSpec(memory_space=pltpu.MemorySpace.VMEM),
    )(*flat_inputs)


# ----------------------------------------------------------------------------
# Parameter init mimicking PyTorch's U(-1/sqrt(H), 1/sqrt(H)), PyTorch layout.
# ----------------------------------------------------------------------------
def init_params(key, input_dim, hidden_dim, num_layers, output_dim):
    params = {}
    bound = 1.0 / (hidden_dim ** 0.5)
    for layer in range(num_layers):
        in_dim = input_dim if layer == 0 else hidden_dim
        key, k1, k2, k3, k4 = jax.random.split(key, 5)
        params[f"lstm_l{layer}"] = {
            "w_ih": jax.random.uniform(k1, (4 * hidden_dim, in_dim),
                                       minval=-bound, maxval=bound,
                                       dtype=jnp.float32),
            "w_hh": jax.random.uniform(k2, (4 * hidden_dim, hidden_dim),
                                       minval=-bound, maxval=bound,
                                       dtype=jnp.float32),
            "b_ih": jax.random.uniform(k3, (4 * hidden_dim,),
                                       minval=-bound, maxval=bound,
                                       dtype=jnp.float32),
            "b_hh": jax.random.uniform(k4, (4 * hidden_dim,),
                                       minval=-bound, maxval=bound,
                                       dtype=jnp.float32),
        }
    key, kl = jax.random.split(key)
    params["linear"] = jax.random.uniform(kl, (output_dim, hidden_dim),
                                          minval=-bound, maxval=bound,
                                          dtype=jnp.float32)
    return params


def prepare_kernel_params(params, hidden_dim, num_layers):
    """Transpose, pre-sum biases, fold 0.5 into sigmoid-gate rows, cast to bf16."""
    H = hidden_dim
    # PyTorch gate order [i, f, g, o]: scale i/f/o by 0.5 (sigmoid -> tanh trick).
    scale = jnp.concatenate([
        jnp.full((H,), 0.5), jnp.full((H,), 0.5),
        jnp.ones((H,)), jnp.full((H,), 0.5),
    ]).astype(jnp.float32)

    kp = {}
    for layer in range(num_layers):
        p = params[f"lstm_l{layer}"]
        w_ih = p["w_ih"] * scale[:, None]
        w_hh = p["w_hh"] * scale[:, None]
        b = (p["b_ih"] + p["b_hh"]) * scale
        kp[f"lstm_l{layer}"] = (
            w_ih.T.astype(jnp.bfloat16),                     # (Din_l, 4H)
            w_hh.T.astype(jnp.bfloat16),                     # (H, 4H)
            b.reshape(1, 4 * H).astype(jnp.float32),         # (1, 4H)
        )
    kp["linear"] = params["linear"].astype(jnp.float32)      # (out_dim, H)
    return kp


# ----------------------------------------------------------------------------
# Pure-JAX f32 reference (PyTorch semantics) for correctness check.
# ----------------------------------------------------------------------------
def reference_forward(x, params, num_layers, hidden_dim):
    H = hidden_dim
    h_seq = x
    for layer in range(num_layers):
        p = params[f"lstm_l{layer}"]
        w_ih_t = p["w_ih"].T
        w_hh_t = p["w_hh"].T
        bias = p["b_ih"] + p["b_hh"]
        T, B, _ = h_seq.shape
        h = jnp.zeros((B, H), jnp.float32)
        c = jnp.zeros((B, H), jnp.float32)
        outs = []
        for t in range(T):
            gates = h_seq[t] @ w_ih_t + h @ w_hh_t + bias
            i_g = jax.nn.sigmoid(gates[:, 0 * H:1 * H])
            f_g = jax.nn.sigmoid(gates[:, 1 * H:2 * H])
            g_g = jnp.tanh(gates[:, 2 * H:3 * H])
            o_g = jax.nn.sigmoid(gates[:, 3 * H:4 * H])
            c = f_g * c + i_g * g_g
            h = o_g * jnp.tanh(c)
            outs.append(h)
        h_seq = jnp.stack(outs, axis=0)
    return h_seq[-1] @ params["linear"].T


if __name__ == "__main__":
    # Model hyperparams.
    input_dim, batch_size, hidden_dim = 4, 2, 32
    dropout, num_layers, output_dim = 0.0, 2, 1
    seq_len = 8
    # Inter-layer dropout is not implemented in the kernel; guard the config.
    assert dropout == 0.0, "kernel assumes dropout=0.0 (eval-mode semantics)"

    key = jax.random.PRNGKey(0)
    key, kx = jax.random.split(key)
    # layout: (T, B, input_dim) time-major, float32 (nn.LSTM batch_first=False)
    x = jax.random.normal(kx, (seq_len, batch_size, input_dim),
                          dtype=jnp.float32)

    params = init_params(key, input_dim, hidden_dim, num_layers, output_dim)
    kparams = prepare_kernel_params(params, hidden_dim, num_layers)

    preds = model_forward(x, kparams, num_layers)
    preds = jax.block_until_ready(preds)
    assert preds.shape == (batch_size, output_dim)

    ref = reference_forward(x, params, num_layers, hidden_dim)
    # bf16 matmul operands in the kernel vs f32 reference -> loosened tolerance.
    assert jnp.allclose(preds, ref, atol=5e-2, rtol=5e-2), (preds, ref)

    print("KERNEL_OK")
</pallas_src>

<mosaic_0001>
module attributes {stable_mosaic.version = 11 : i64} {
  func.func @_fused_lstm_kernel(%arg0: memref<8x2x4xf32, #tpu.memory_space<vmem>>, %arg1: memref<4x128xbf16, #tpu.memory_space<vmem>>, %arg2: memref<32x128xbf16, #tpu.memory_space<vmem>>, %arg3: memref<1x128xf32, #tpu.memory_space<vmem>>, %arg4: memref<32x128xbf16, #tpu.memory_space<vmem>>, %arg5: memref<32x128xbf16, #tpu.memory_space<vmem>>, %arg6: memref<1x128xf32, #tpu.memory_space<vmem>>, %arg7: memref<1x32xf32, #tpu.memory_space<vmem>>, %arg8: memref<2x1xf32, #tpu.memory_space<vmem>>) attributes {dimension_semantics = [], scalar_prefetch = 0 : i64, scratch_operands = 0 : i64, tpu.core_type = #tpu.core_type<tc>} {
    %c0 = arith.constant 0 : index
    %c0_0 = arith.constant 0 : index
    %0 = vector.load %arg1[%c0, %c0_0] : memref<4x128xbf16, #tpu.memory_space<vmem>>, vector<4x128xbf16>
    %c0_1 = arith.constant 0 : index
    %c0_2 = arith.constant 0 : index
    %1 = vector.load %arg4[%c0_1, %c0_2] : memref<32x128xbf16, #tpu.memory_space<vmem>>, vector<32x128xbf16>
    %c0_3 = arith.constant 0 : index
    %c0_4 = arith.constant 0 : index
    %2 = vector.load %arg2[%c0_3, %c0_4] : memref<32x128xbf16, #tpu.memory_space<vmem>>, vector<32x128xbf16>
    %c0_5 = arith.constant 0 : index
    %c0_6 = arith.constant 0 : index
    %3 = vector.load %arg5[%c0_5, %c0_6] : memref<32x128xbf16, #tpu.memory_space<vmem>>, vector<32x128xbf16>
    %c0_7 = arith.constant 0 : index
    %c0_8 = arith.constant 0 : index
    %4 = vector.load %arg3[%c0_7, %c0_8] : memref<1x128xf32, #tpu.memory_space<vmem>>, vector<1x128xf32>
    %c0_9 = arith.constant 0 : index
    %c0_10 = arith.constant 0 : index
    %5 = vector.load %arg6[%c0_9, %c0_10] : memref<1x128xf32, #tpu.memory_space<vmem>>, vector<1x128xf32>
    %c0_11 = arith.constant 0 : index
    %c0_12 = arith.constant 0 : index
    %c0_13 = arith.constant 0 : index
    %6 = vector.load %arg0[%c0_11, %c0_12, %c0_13] : memref<8x2x4xf32, #tpu.memory_space<vmem>>, vector<1x2x4xf32>
    %7 = vector.shape_cast %6 : vector<1x2x4xf32> to vector<2x4xf32>
    %8 = arith.truncf %7 : vector<2x4xf32> to vector<2x4xbf16>
    %cst = arith.constant dense<0.000000e+00> : vector<2x128xf32>
    %9 = tpu.matmul %8, %0, %cst {dimension_numbers = #tpu.dot_dimension_numbers<[1], [0], [0], [1], [0, 0, 1, 1], [], []>} : vector<2x4xbf16>, vector<4x128xbf16>, vector<2x128xf32> -> vector<2x128xf32>
    %10 = vector.broadcast %4 : vector<1x128xf32> to vector<2x128xf32>
    %11 = arith.addf %9, %10 : vector<2x128xf32>
    %c1 = arith.constant 1 : index
    %c0_14 = arith.constant 0 : index
    %c0_15 = arith.constant 0 : index
    %12 = vector.load %arg0[%c1, %c0_14, %c0_15] : memref<8x2x4xf32, #tpu.memory_space<vmem>>, vector<1x2x4xf32>
    %13 = vector.shape_cast %12 : vector<1x2x4xf32> to vector<2x4xf32>
    %14 = arith.truncf %13 : vector<2x4xf32> to vector<2x4xbf16>
    %cst_16 = arith.constant dense<0.000000e+00> : vector<2x128xf32>
    %15 = tpu.matmul %14, %0, %cst_16 {dimension_numbers = #tpu.dot_dimension_numbers<[1], [0], [0], [1], [0, 0, 1, 1], [], []>} : vector<2x4xbf16>, vector<4x128xbf16>, vector<2x128xf32> -> vector<2x128xf32>
    %16 = vector.broadcast %4 : vector<1x128xf32> to vector<2x128xf32>
    %17 = arith.addf %15, %16 : vector<2x128xf32>
    %c2 = arith.constant 2 : index
    %c0_17 = arith.constant 0 : index
    %c0_18 = arith.constant 0 : index
    %18 = vector.load %arg0[%c2, %c0_17, %c0_18] : memref<8x2x4xf32, #tpu.memory_space<vmem>>, vector<1x2x4xf32>
    %19 = vector.shape_cast %18 : vector<1x2x4xf32> to vector<2x4xf32>
    %20 = arith.truncf %19 : vector<2x4xf32> to vector<2x4xbf16>
    %cst_19 = arith.constant dense<0.000000e+00> : vector<2x128xf32>
    %21 = tpu.matmul %20, %0, %cst_19 {dimension_numbers = #tpu.dot_dimension_numbers<[1], [0], [0], [1], [0, 0, 1, 1], [], []>} : vector<2x4xbf16>, vector<4x128xbf16>, vector<2x128xf32> -> vector<2x128xf32>
    %22 = vector.broadcast %4 : vector<1x128xf32> to vector<2x128xf32>
    %23 = arith.addf %21, %22 : vector<2x128xf32>
    %c3 = arith.constant 3 : index
    %c0_20 = arith.constant 0 : index
    %c0_21 = arith.constant 0 : index
    %24 = vector.load %arg0[%c3, %c0_20, %c0_21] : memref<8x2x4xf32, #tpu.memory_space<vmem>>, vector<1x2x4xf32>
    %25 = vector.shape_cast %24 : vector<1x2x4xf32> to vector<2x4xf32>
    %26 = arith.truncf %25 : vector<2x4xf32> to vector<2x4xbf16>
    %cst_22 = arith.constant dense<0.000000e+00> : vector<2x128xf32>
    %27 = tpu.matmul %26, %0, %cst_22 {dimension_numbers = #tpu.dot_dimension_numbers<[1], [0], [0], [1], [0, 0, 1, 1], [], []>} : vector<2x4xbf16>, vector<4x128xbf16>, vector<2x128xf32> -> vector<2x128xf32>
    %28 = vector.broadcast %4 : vector<1x128xf32> to vector<2x128xf32>
    %29 = arith.addf %27, %28 : vector<2x128xf32>
    %c4 = arith.constant 4 : index
    %c0_23 = arith.constant 0 : index
    %c0_24 = arith.constant 0 : index
    %30 = vector.load %arg0[%c4, %c0_23, %c0_24] : memref<8x2x4xf32, #tpu.memory_space<vmem>>, vector<1x2x4xf32>
    %31 = vector.shape_cast %30 : vector<1x2x4xf32> to vector<2x4xf32>
    %32 = arith.truncf %31 : vector<2x4xf32> to vector<2x4xbf16>
    %cst_25 = arith.constant dense<0.000000e+00> : vector<2x128xf32>
    %33 = tpu.matmul %32, %0, %cst_25 {dimension_numbers = #tpu.dot_dimension_numbers<[1], [0], [0], [1], [0, 0, 1, 1], [], []>} : vector<2x4xbf16>, vector<4x128xbf16>, vector<2x128xf32> -> vector<2x128xf32>
    %34 = vector.broadcast %4 : vector<1x128xf32> to vector<2x128xf32>
    %35 = arith.addf %33, %34 : vector<2x128xf32>
    %c5 = arith.constant 5 : index
    %c0_26 = arith.constant 0 : index
    %c0_27 = arith.constant 0 : index
    %36 = vector.load %arg0[%c5, %c0_26, %c0_27] : memref<8x2x4xf32, #tpu.memory_space<vmem>>, vector<1x2x4xf32>
    %37 = vector.shape_cast %36 : vector<1x2x4xf32> to vector<2x4xf32>
    %38 = arith.truncf %37 : vector<2x4xf32> to vector<2x4xbf16>
    %cst_28 = arith.constant dense<0.000000e+00> : vector<2x128xf32>
    %39 = tpu.matmul %38, %0, %cst_28 {dimension_numbers = #tpu.dot_dimension_numbers<[1], [0], [0], [1], [0, 0, 1, 1], [], []>} : vector<2x4xbf16>, vector<4x128xbf16>, vector<2x128xf32> -> vector<2x128xf32>
    %40 = vector.broadcast %4 : vector<1x128xf32> to vector<2x128xf32>
    %41 = arith.addf %39, %40 : vector<2x128xf32>
    %c6 = arith.constant 6 : index
    %c0_29 = arith.constant 0 : index
    %c0_30 = arith.constant 0 : index
    %42 = vector.load %arg0[%c6, %c0_29, %c0_30] : memref<8x2x4xf32, #tpu.memory_space<vmem>>, vector<1x2x4xf32>
    %43 = vector.shape_cast %42 : vector<1x2x4xf32> to vector<2x4xf32>
    %44 = arith.truncf %43 : vector<2x4xf32> to vector<2x4xbf16>
    %cst_31 = arith.constant dense<0.000000e+00> : vector<2x128xf32>
    %45 = tpu.matmul %44, %0, %cst_31 {dimension_numbers = #tpu.dot_dimension_numbers<[1], [0], [0], [1], [0, 0, 1, 1], [], []>} : vector<2x4xbf16>, vector<4x128xbf16>, vector<2x128xf32> -> vector<2x128xf32>
    %46 = vector.broadcast %4 : vector<1x128xf32> to vector<2x128xf32>
    %47 = arith.addf %45, %46 : vector<2x128xf32>
    %c7 = arith.constant 7 : index
    %c0_32 = arith.constant 0 : index
    %c0_33 = arith.constant 0 : index
    %48 = vector.load %arg0[%c7, %c0_32, %c0_33] : memref<8x2x4xf32, #tpu.memory_space<vmem>>, vector<1x2x4xf32>
    %49 = vector.shape_cast %48 : vector<1x2x4xf32> to vector<2x4xf32>
    %50 = arith.truncf %49 : vector<2x4xf32> to vector<2x4xbf16>
    %cst_34 = arith.constant dense<0.000000e+00> : vector<2x128xf32>
    %51 = tpu.matmul %50, %0, %cst_34 {dimension_numbers = #tpu.dot_dimension_numbers<[1], [0], [0], [1], [0, 0, 1, 1], [], []>} : vector<2x4xbf16>, vector<4x128xbf16>, vector<2x128xf32> -> vector<2x128xf32>
    %52 = vector.broadcast %4 : vector<1x128xf32> to vector<2x128xf32>
    %53 = arith.addf %51, %52 : vector<2x128xf32>
    %cst_35 = arith.constant 0.000000e+00 : bf16
    %54 = vector.broadcast %cst_35 : bf16 to vector<2x32xbf16>
    %cst_36 = arith.constant 0.000000e+00 : bf16
    %55 = vector.broadcast %cst_36 : bf16 to vector<2x32xbf16>
    %cst_37 = arith.constant 0.000000e+00 : f32
    %56 = vector.broadcast %cst_37 : f32 to vector<2x32xf32>
    %cst_38 = arith.constant 0.000000e+00 : f32
    %57 = vector.broadcast %cst_38 : f32 to vector<2x32xf32>
    %cst_39 = arith.constant dense<0.000000e+00> : vector<2x128xf32>
    %58 = tpu.matmul %54, %2, %cst_39 {dimension_numbers = #tpu.dot_dimension_numbers<[1], [0], [0], [1], [0, 0, 1, 1], [], []>} : vector<2x32xbf16>, vector<32x128xbf16>, vector<2x128xf32> -> vector<2x128xf32>
    %59 = arith.addf %11, %58 : vector<2x128xf32>
    %60 = math.tanh %59 : vector<2x128xf32>
    %cst_40 = arith.constant 5.000000e-01 : f32
    %61 = vector.broadcast %cst_40 : f32 to vector<2x128xf32>
    %62 = arith.mulf %61, %60 : vector<2x128xf32>
    %cst_41 = arith.constant 5.000000e-01 : f32
    %63 = vector.broadcast %cst_41 : f32 to vector<2x128xf32>
    %64 = arith.addf %62, %63 : vector<2x128xf32>
    %65 = vector.extract_strided_slice %64 {offsets = [0, 0], sizes = [2, 32], strides = [1, 1]} : vector<2x128xf32> to vector<2x32xf32>
    %66 = vector.extract_strided_slice %64 {offsets = [0, 32], sizes = [2, 32], strides = [1, 1]} : vector<2x128xf32> to vector<2x32xf32>
    %67 = vector.extract_strided_slice %60 {offsets = [0, 64], sizes = [2, 32], strides = [1, 1]} : vector<2x128xf32> to vector<2x32xf32>
    %68 = vector.extract_strided_slice %64 {offsets = [0, 96], sizes = [2, 32], strides = [1, 1]} : vector<2x128xf32> to vector<2x32xf32>
    %69 = arith.mulf %66, %56 : vector<2x32xf32>
    %70 = arith.mulf %65, %67 : vector<2x32xf32>
    %71 = arith.addf %69, %70 : vector<2x32xf32>
    %72 = math.tanh %71 : vector<2x32xf32>
    %73 = arith.mulf %68, %72 : vector<2x32xf32>
    %74 = arith.truncf %73 : vector<2x32xf32> to vector<2x32xbf16>
    %cst_42 = arith.constant dense<0.000000e+00> : vector<2x128xf32>
    %75 = tpu.matmul %74, %1, %cst_42 {dimension_numbers = #tpu.dot_dimension_numbers<[1], [0], [0], [1], [0, 0, 1, 1], [], []>} : vector<2x32xbf16>, vector<32x128xbf16>, vector<2x128xf32> -> vector<2x128xf32>
    %76 = vector.broadcast %5 : vector<1x128xf32> to vector<2x128xf32>
    %77 = arith.addf %75, %76 : vector<2x128xf32>
    %cst_43 = arith.constant dense<0.000000e+00> : vector<2x128xf32>
    %78 = tpu.matmul %74, %2, %cst_43 {dimension_numbers = #tpu.dot_dimension_numbers<[1], [0], [0], [1], [0, 0, 1, 1], [], []>} : vector<2x32xbf16>, vector<32x128xbf16>, vector<2x128xf32> -> vector<2x128xf32>
    %79 = arith.addf %17, %78 : vector<2x128xf32>
    %80 = math.tanh %79 : vector<2x128xf32>
    %cst_44 = arith.constant 5.000000e-01 : f32
    %81 = vector.broadcast %cst_44 : f32 to vector<2x128xf32>
    %82 = arith.mulf %81, %80 : vector<2x128xf32>
    %cst_45 = arith.constant 5.000000e-01 : f32
    %83 = vector.broadcast %cst_45 : f32 to vector<2x128xf32>
    %84 = arith.addf %82, %83 : vector<2x128xf32>
    %85 = vector.extract_strided_slice %84 {offsets = [0, 0], sizes = [2, 32], strides = [1, 1]} : vector<2x128xf32> to vector<2x32xf32>
    %86 = vector.extract_strided_slice %84 {offsets = [0, 32], sizes = [2, 32], strides = [1, 1]} : vector<2x128xf32> to vector<2x32xf32>
    %87 = vector.extract_strided_slice %80 {offsets = [0, 64], sizes = [2, 32], strides = [1, 1]} : vector<2x128xf32> to vector<2x32xf32>
    %88 = vector.extract_strided_slice %84 {offsets = [0, 96], sizes = [2, 32], strides = [1, 1]} : vector<2x128xf32> to vector<2x32xf32>
    %89 = arith.mulf %86, %71 : vector<2x32xf32>
    %90 = arith.mulf %85, %87 : vector<2x32xf32>
    %91 = arith.addf %89, %90 : vector<2x32xf32>
    %92 = math.tanh %91 : vector<2x32xf32>
    %93 = arith.mulf %88, %92 : vector<2x32xf32>
    %94 = arith.truncf %93 : vector<2x32xf32> to vector<2x32xbf16>
    %cst_46 = arith.constant dense<0.000000e+00> : vector<2x128xf32>
    %95 = tpu.matmul %94, %1, %cst_46 {dimension_numbers = #tpu.dot_dimension_numbers<[1], [0], [0], [1], [0, 0, 1, 1], [], []>} : vector<2x32xbf16>, vector<32x128xbf16>, vector<2x128xf32> -> vector<2x128xf32>
    %96 = vector.broadcast %5 : vector<1x128xf32> to vector<2x128xf32>
    %97 = arith.addf %95, %96 : vector<2x128xf32>
    %cst_47 = arith.constant dense<0.000000e+00> : vector<2x128xf32>
    %98 = tpu.matmul %55, %3, %cst_47 {dimension_numbers = #tpu.dot_dimension_numbers<[1], [0], [0], [1], [0, 0, 1, 1], [], []>} : vector<2x32xbf16>, vector<32x128xbf16>, vector<2x128xf32> -> vector<2x128xf32>
    %99 = arith.addf %77, %98 : vector<2x128xf32>
    %100 = math.tanh %99 : vector<2x128xf32>
    %cst_48 = arith.constant 5.000000e-01 : f32
    %101 = vector.broadcast %cst_48 : f32 to vector<2x128xf32>
    %102 = arith.mulf %101, %100 : vector<2x128xf32>
    %cst_49 = arith.constant 5.000000e-01 : f32
    %103 = vector.broadcast %cst_49 : f32 to vector<2x128xf32>
    %104 = arith.addf %102, %103 : vector<2x128xf32>
    %105 = vector.extract_strided_slice %104 {offsets = [0, 0], sizes = [2, 32], strides = [1, 1]} : vector<2x128xf32> to vector<2x32xf32>
    %106 = vector.extract_strided_slice %104 {offsets = [0, 32], sizes = [2, 32], strides = [1, 1]} : vector<2x128xf32> to vector<2x32xf32>
    %107 = vector.extract_strided_slice %100 {offsets = [0, 64], sizes = [2, 32], strides = [1, 1]} : vector<2x128xf32> to vector<2x32xf32>
    %108 = vector.extract_strided_slice %104 {offsets = [0, 96], sizes = [2, 32], strides = [1, 1]} : vector<2x128xf32> to vector<2x32xf32>
    %109 = arith.mulf %106, %57 : vector<2x32xf32>
    %110 = arith.mulf %105, %107 : vector<2x32xf32>
    %111 = arith.addf %109, %110 : vector<2x32xf32>
    %112 = math.tanh %111 : vector<2x32xf32>
    %113 = arith.mulf %108, %112 : vector<2x32xf32>
    %114 = arith.truncf %113 : vector<2x32xf32> to vector<2x32xbf16>
    %cst_50 = arith.constant dense<0.000000e+00> : vector<2x128xf32>
    %115 = tpu.matmul %94, %2, %cst_50 {dimension_numbers = #tpu.dot_dimension_numbers<[1], [0], [0], [1], [0, 0, 1, 1], [], []>} : vector<2x32xbf16>, vector<32x128xbf16>, vector<2x128xf32> -> vector<2x128xf32>
    %116 = arith.addf %23, %115 : vector<2x128xf32>
    %117 = math.tanh %116 : vector<2x128xf32>
    %cst_51 = arith.constant 5.000000e-01 : f32
    %118 = vector.broadcast %cst_51 : f32 to vector<2x128xf32>
    %119 = arith.mulf %118, %117 : vector<2x128xf32>
    %cst_52 = arith.constant 5.000000e-01 : f32
    %120 = vector.broadcast %cst_52 : f32 to vector<2x128xf32>
    %121 = arith.addf %119, %120 : vector<2x128xf32>
    %122 = vector.extract_strided_slice %121 {offsets = [0, 0], sizes = [2, 32], strides = [1, 1]} : vector<2x128xf32> to vector<2x32xf32>
    %123 = vector.extract_strided_slice %121 {offsets = [0, 32], sizes = [2, 32], strides = [1, 1]} : vector<2x128xf32> to vector<2x32xf32>
    %124 = vector.extract_strided_slice %117 {offsets = [0, 64], sizes = [2, 32], strides = [1, 1]} : vector<2x128xf32> to vector<2x32xf32>
    %125 = vector.extract_strided_slice %121 {offsets = [0, 96], sizes = [2, 32], strides = [1, 1]} : vector<2x128xf32> to vector<2x32xf32>
    %126 = arith.mulf %123, %91 : vector<2x32xf32>
    %127 = arith.mulf %122, %124 : vector<2x32xf32>
    %128 = arith.addf %126, %127 : vector<2x32xf32>
    %129 = math.tanh %128 : vector<2x32xf32>
    %130 = arith.mulf %125, %129 : vector<2x32xf32>
    %131 = arith.truncf %130 : vector<2x32xf32> to vector<2x32xbf16>
    %cst_53 = arith.constant dense<0.000000e+00> : vector<2x128xf32>
    %132 = tpu.matmul %131, %1, %cst_53 {dimension_numbers = #tpu.dot_dimension_numbers<[1], [0], [0], [1], [0, 0, 1, 1], [], []>} : vector<2x32xbf16>, vector<32x128xbf16>, vector<2x128xf32> -> vector<2x128xf32>
    %133 = vector.broadcast %5 : vector<1x128xf32> to vector<2x128xf32>
    %134 = arith.addf %132, %133 : vector<2x128xf32>
    %cst_54 = arith.constant dense<0.000000e+00> : vector<2x128xf32>
    %135 = tpu.matmul %114, %3, %cst_54 {dimension_numbers = #tpu.dot_dimension_numbers<[1], [0], [0], [1], [0, 0, 1, 1], [], []>} : vector<2x32xbf16>, vector<32x128xbf16>, vector<2x128xf32> -> vector<2x128xf32>
    %136 = arith.addf %97, %135 : vector<2x128xf32>
    %137 = math.tanh %136 : vector<2x128xf32>
    %cst_55 = arith.constant 5.000000e-01 : f32
    %138 = vector.broadcast %cst_55 : f32 to vector<2x128xf32>
    %139 = arith.mulf %138, %137 : vector<2x128xf32>
    %cst_56 = arith.constant 5.000000e-01 : f32
    %140 = vector.broadcast %cst_56 : f32 to vector<2x128xf32>
    %141 = arith.addf %139, %140 : vector<2x128xf32>
    %142 = vector.extract_strided_slice %141 {offsets = [0, 0], sizes = [2, 32], strides = [1, 1]} : vector<2x128xf32> to vector<2x32xf32>
    %143 = vector.extract_strided_slice %141 {offsets = [0, 32], sizes = [2, 32], strides = [1, 1]} : vector<2x128xf32> to vector<2x32xf32>
    %144 = vector.extract_strided_slice %137 {offsets = [0, 64], sizes = [2, 32], strides = [1, 1]} : vector<2x128xf32> to vector<2x32xf32>
    %145 = vector.extract_strided_slice %141 {offsets = [0, 96], sizes = [2, 32], strides = [1, 1]} : vector<2x128xf32> to vector<2x32xf32>
    %146 = arith.mulf %143, %111 : vector<2x32xf32>
    %147 = arith.mulf %142, %144 : vector<2x32xf32>
    %148 = arith.addf %146, %147 : vector<2x32xf32>
    %149 = math.tanh %148 : vector<2x32xf32>
    %150 = arith.mulf %145, %149 : vector<2x32xf32>
    %151 = arith.truncf %150 : vector<2x32xf32> to vector<2x32xbf16>
    %cst_57 = arith.constant dense<0.000000e+00> : vector<2x128xf32>
    %152 = tpu.matmul %131, %2, %cst_57 {dimension_numbers = #tpu.dot_dimension_numbers<[1], [0], [0], [1], [0, 0, 1, 1], [], []>} : vector<2x32xbf16>, vector<32x128xbf16>, vector<2x128xf32> -> vector<2x128xf32>
    %153 = arith.addf %29, %152 : vector<2x128xf32>
    %154 = math.tanh %153 : vector<2x128xf32>
    %cst_58 = arith.constant 5.000000e-01 : f32
    %155 = vector.broadcast %cst_58 : f32 to vector<2x128xf32>
    %156 = arith.mulf %155, %154 : vector<2x128xf32>
    %cst_59 = arith.constant 5.000000e-01 : f32
    %157 = vector.broadcast %cst_59 : f32 to vector<2x128xf32>
    %158 = arith.addf %156, %157 : vector<2x128xf32>
    %159 = vector.extract_strided_slice %158 {offsets = [0, 0], sizes = [2, 32], strides = [1, 1]} : vector<2x128xf32> to vector<2x32xf32>
    %160 = vector.extract_strided_slice %158 {offsets = [0, 32], sizes = [2, 32], strides = [1, 1]} : vector<2x128xf32> to vector<2x32xf32>
    %161 = vector.extract_strided_slice %154 {offsets = [0, 64], sizes = [2, 32], strides = [1, 1]} : vector<2x128xf32> to vector<2x32xf32>
    %162 = vector.extract_strided_slice %158 {offsets = [0, 96], sizes = [2, 32], strides = [1, 1]} : vector<2x128xf32> to vector<2x32xf32>
    %163 = arith.mulf %160, %128 : vector<2x32xf32>
    %164 = arith.mulf %159, %161 : vector<2x32xf32>
    %165 = arith.addf %163, %164 : vector<2x32xf32>
    %166 = math.tanh %165 : vector<2x32xf32>
    %167 = arith.mulf %162, %166 : vector<2x32xf32>
    %168 = arith.truncf %167 : vector<2x32xf32> to vector<2x32xbf16>
    %cst_60 = arith.constant dense<0.000000e+00> : vector<2x128xf32>
    %169 = tpu.matmul %168, %1, %cst_60 {dimension_numbers = #tpu.dot_dimension_numbers<[1], [0], [0], [1], [0, 0, 1, 1], [], []>} : vector<2x32xbf16>, vector<32x128xbf16>, vector<2x128xf32> -> vector<2x128xf32>
    %170 = vector.broadcast %5 : vector<1x128xf32> to vector<2x128xf32>
    %171 = arith.addf %169, %170 : vector<2x128xf32>
    %cst_61 = arith.constant dense<0.000000e+00> : vector<2x128xf32>
    %172 = tpu.matmul %151, %3, %cst_61 {dimension_numbers = #tpu.dot_dimension_numbers<[1], [0], [0], [1], [0, 0, 1, 1], [], []>} : vector<2x32xbf16>, vector<32x128xbf16>, vector<2x128xf32> -> vector<2x128xf32>
    %173 = arith.addf %134, %172 : vector<2x128xf32>
    %174 = math.tanh %173 : vector<2x128xf32>
    %cst_62 = arith.constant 5.000000e-01 : f32
    %175 = vector.broadcast %cst_62 : f32 to vector<2x128xf32>
    %176 = arith.mulf %175, %174 : vector<2x128xf32>
    %cst_63 = arith.constant 5.000000e-01 : f32
    %177 = vector.broadcast %cst_63 : f32 to vector<2x128xf32>
    %178 = arith.addf %176, %177 : vector<2x128xf32>
    %179 = vector.extract_strided_slice %178 {offsets = [0, 0], sizes = [2, 32], strides = [1, 1]} : vector<2x128xf32> to vector<2x32xf32>
    %180 = vector.extract_strided_slice %178 {offsets = [0, 32], sizes = [2, 32], strides = [1, 1]} : vector<2x128xf32> to vector<2x32xf32>
    %181 = vector.extract_strided_slice %174 {offsets = [0, 64], sizes = [2, 32], strides = [1, 1]} : vector<2x128xf32> to vector<2x32xf32>
    %182 = vector.extract_strided_slice %178 {offsets = [0, 96], sizes = [2, 32], strides = [1, 1]} : vector<2x128xf32> to vector<2x32xf32>
    %183 = arith.mulf %180, %148 : vector<2x32xf32>
    %184 = arith.mulf %179, %181 : vector<2x32xf32>
    %185 = arith.addf %183, %184 : vector<2x32xf32>
    %186 = math.tanh %185 : vector<2x32xf32>
    %187 = arith.mulf %182, %186 : vector<2x32xf32>
    %188 = arith.truncf %187 : vector<2x32xf32> to vector<2x32xbf16>
    %cst_64 = arith.constant dense<0.000000e+00> : vector<2x128xf32>
    %189 = tpu.matmul %168, %2, %cst_64 {dimension_numbers = #tpu.dot_dimension_numbers<[1], [0], [0], [1], [0, 0, 1, 1], [], []>} : vector<2x32xbf16>, vector<32x128xbf16>, vector<2x128xf32> -> vector<2x128xf32>
    %190 = arith.addf %35, %189 : vector<2x128xf32>
    %191 = math.tanh %190 : vector<2x128xf32>
    %cst_65 = arith.constant 5.000000e-01 : f32
    %192 = vector.broadcast %cst_65 : f32 to vector<2x128xf32>
    %193 = arith.mulf %192, %191 : vector<2x128xf32>
    %cst_66 = arith.constant 5.000000e-01 : f32
    %194 = vector.broadcast %cst_66 : f32 to vector<2x128xf32>
    %195 = arith.addf %193, %194 : vector<2x128xf32>
    %196 = vector.extract_strided_slice %195 {offsets = [0, 0], sizes = [2, 32], strides = [1, 1]} : vector<2x128xf32> to vector<2x32xf32>
    %197 = vector.extract_strided_slice %195 {offsets = [0, 32], sizes = [2, 32], strides = [1, 1]} : vector<2x128xf32> to vector<2x32xf32>
    %198 = vector.extract_strided_slice %191 {offsets = [0, 64], sizes = [2, 32], strides = [1, 1]} : vector<2x128xf32> to vector<2x32xf32>
    %199 = vector.extract_strided_slice %195 {offsets = [0, 96], sizes = [2, 32], strides = [1, 1]} : vector<2x128xf32> to vector<2x32xf32>
    %200 = arith.mulf %197, %165 : vector<2x32xf32>
    %201 = arith.mulf %196, %198 : vector<2x32xf32>
    %202 = arith.addf %200, %201 : vector<2x32xf32>
    %203 = math.tanh %202 : vector<2x32xf32>
    %204 = arith.mulf %199, %203 : vector<2x32xf32>
    %205 = arith.truncf %204 : vector<2x32xf32> to vector<2x32xbf16>
    %cst_67 = arith.constant dense<0.000000e+00> : vector<2x128xf32>
    %206 = tpu.matmul %205, %1, %cst_67 {dimension_numbers = #tpu.dot_dimension_numbers<[1], [0], [0], [1], [0, 0, 1, 1], [], []>} : vector<2x32xbf16>, vector<32x128xbf16>, vector<2x128xf32> -> vector<2x128xf32>
    %207 = vector.broadcast %5 : vector<1x128xf32> to vector<2x128xf32>
    %208 = arith.addf %206, %207 : vector<2x128xf32>
    %cst_68 = arith.constant dense<0.000000e+00> : vector<2x128xf32>
    %209 = tpu.matmul %188, %3, %cst_68 {dimension_numbers = #tpu.dot_dimension_numbers<[1], [0], [0], [1], [0, 0, 1, 1], [], []>} : vector<2x32xbf16>, vector<32x128xbf16>, vector<2x128xf32> -> vector<2x128xf32>
    %210 = arith.addf %171, %209 : vector<2x128xf32>
    %211 = math.tanh %210 : vector<2x128xf32>
    %cst_69 = arith.constant 5.000000e-01 : f32
    %212 = vector.broadcast %cst_69 : f32 to vector<2x128xf32>
    %213 = arith.mulf %212, %211 : vector<2x128xf32>
    %cst_70 = arith.constant 5.000000e-01 : f32
    %214 = vector.broadcast %cst_70 : f32 to vector<2x128xf32>
    %215 = arith.addf %213, %214 : vector<2x128xf32>
    %216 = vector.extract_strided_slice %215 {offsets = [0, 0], sizes = [2, 32], strides = [1, 1]} : vector<2x128xf32> to vector<2x32xf32>
    %217 = vector.extract_strided_slice %215 {offsets = [0, 32], sizes = [2, 32], strides = [1, 1]} : vector<2x128xf32> to vector<2x32xf32>
    %218 = vector.extract_strided_slice %211 {offsets = [0, 64], sizes = [2, 32], strides = [1, 1]} : vector<2x128xf32> to vector<2x32xf32>
    %219 = vector.extract_strided_slice %215 {offsets = [0, 96], sizes = [2, 32], strides = [1, 1]} : vector<2x128xf32> to vector<2x32xf32>
    %220 = arith.mulf %217, %185 : vector<2x32xf32>
    %221 = arith.mulf %216, %218 : vector<2x32xf32>
    %222 = arith.addf %220, %221 : vector<2x32xf32>
    %223 = math.tanh %222 : vector<2x32xf32>
    %224 = arith.mulf %219, %223 : vector<2x32xf32>
    %225 = arith.truncf %224 : vector<2x32xf32> to vector<2x32xbf16>
    %cst_71 = arith.constant dense<0.000000e+00> : vector<2x128xf32>
    %226 = tpu.matmul %205, %2, %cst_71 {dimension_numbers = #tpu.dot_dimension_numbers<[1], [0], [0], [1], [0, 0, 1, 1], [], []>} : vector<2x32xbf16>, vector<32x128xbf16>, vector<2x128xf32> -> vector<2x128xf32>
    %227 = arith.addf %41, %226 : vector<2x128xf32>
    %228 = math.tanh %227 : vector<2x128xf32>
    %cst_72 = arith.constant 5.000000e-01 : f32
    %229 = vector.broadcast %cst_72 : f32 to vector<2x128xf32>
    %230 = arith.mulf %229, %228 : vector<2x128xf32>
    %cst_73 = arith.constant 5.000000e-01 : f32
    %231 = vector.broadcast %cst_73 : f32 to vector<2x128xf32>
    %232 = arith.addf %230, %231 : vector<2x128xf32>
    %233 = vector.extract_strided_slice %232 {offsets = [0, 0], sizes = [2, 32], strides = [1, 1]} : vector<2x128xf32> to vector<2x32xf32>
    %234 = vector.extract_strided_slice %232 {offsets = [0, 32], sizes = [2, 32], strides = [1, 1]} : vector<2x128xf32> to vector<2x32xf32>
    %235 = vector.extract_strided_slice %228 {offsets = [0, 64], sizes = [2, 32], strides = [1, 1]} : vector<2x128xf32> to vector<2x32xf32>
    %236 = vector.extract_strided_slice %232 {offsets = [0, 96], sizes = [2, 32], strides = [1, 1]} : vector<2x128xf32> to vector<2x32xf32>
    %237 = arith.mulf %234, %202 : vector<2x32xf32>
    %238 = arith.mulf %233, %235 : vector<2x32xf32>
    %239 = arith.addf %237, %238 : vector<2x32xf32>
    %240 = math.tanh %239 : vector<2x32xf32>
    %241 = arith.mulf %236, %240 : vector<2x32xf32>
    %242 = arith.truncf %241 : vector<2x32xf32> to vector<2x32xbf16>
    %cst_74 = arith.constant dense<0.000000e+00> : vector<2x128xf32>
    %243 = tpu.matmul %242, %1, %cst_74 {dimension_numbers = #tpu.dot_dimension_numbers<[1], [0], [0], [1], [0, 0, 1, 1], [], []>} : vector<2x32xbf16>, vector<32x128xbf16>, vector<2x128xf32> -> vector<2x128xf32>
    %244 = vector.broadcast %5 : vector<1x128xf32> to vector<2x128xf32>
    %245 = arith.addf %243, %244 : vector<2x128xf32>
    %cst_75 = arith.constant dense<0.000000e+00> : vector<2x128xf32>
    %246 = tpu.matmul %225, %3, %cst_75 {dimension_numbers = #tpu.dot_dimension_numbers<[1], [0], [0], [1], [0, 0, 1, 1], [], []>} : vector<2x32xbf16>, vector<32x128xbf16>, vector<2x128xf32> -> vector<2x128xf32>
    %247 = arith.addf %208, %246 : vector<2x128xf32>
    %248 = math.tanh %247 : vector<2x128xf32>
    %cst_76 = arith.constant 5.000000e-01 : f32
    %249 = vector.broadcast %cst_76 : f32 to vector<2x128xf32>
    %250 = arith.mulf %249, %248 : vector<2x128xf32>
    %cst_77 = arith.constant 5.000000e-01 : f32
    %251 = vector.broadcast %cst_77 : f32 to vector<2x128xf32>
    %252 = arith.addf %250, %251 : vector<2x128xf32>
    %253 = vector.extract_strided_slice %252 {offsets = [0, 0], sizes = [2, 32], strides = [1, 1]} : vector<2x128xf32> to vector<2x32xf32>
    %254 = vector.extract_strided_slice %252 {offsets = [0, 32], sizes = [2, 32], strides = [1, 1]} : vector<2x128xf32> to vector<2x32xf32>
    %255 = vector.extract_strided_slice %248 {offsets = [0, 64], sizes = [2, 32], strides = [1, 1]} : vector<2x128xf32> to vector<2x32xf32>
    %256 = vector.extract_strided_slice %252 {offsets = [0, 96], sizes = [2, 32], strides = [1, 1]} : vector<2x128xf32> to vector<2x32xf32>
    %257 = arith.mulf %254, %222 : vector<2x32xf32>
    %258 = arith.mulf %253, %255 : vector<2x32xf32>
    %259 = arith.addf %257, %258 : vector<2x32xf32>
    %260 = math.tanh %259 : vector<2x32xf32>
    %261 = arith.mulf %256, %260 : vector<2x32xf32>
    %262 = arith.truncf %261 : vector<2x32xf32> to vector<2x32xbf16>
    %cst_78 = arith.constant dense<0.000000e+00> : vector<2x128xf32>
    %263 = tpu.matmul %242, %2, %cst_78 {dimension_numbers = #tpu.dot_dimension_numbers<[1], [0], [0], [1], [0, 0, 1, 1], [], []>} : vector<2x32xbf16>, vector<32x128xbf16>, vector<2x128xf32> -> vector<2x128xf32>
    %264 = arith.addf %47, %263 : vector<2x128xf32>
    %265 = math.tanh %264 : vector<2x128xf32>
    %cst_79 = arith.constant 5.000000e-01 : f32
    %266 = vector.broadcast %cst_79 : f32 to vector<2x128xf32>
    %267 = arith.mulf %266, %265 : vector<2x128xf32>
    %cst_80 = arith.constant 5.000000e-01 : f32
    %268 = vector.broadcast %cst_80 : f32 to vector<2x128xf32>
    %269 = arith.addf %267, %268 : vector<2x128xf32>
    %270 = vector.extract_strided_slice %269 {offsets = [0, 0], sizes = [2, 32], strides = [1, 1]} : vector<2x128xf32> to vector<2x32xf32>
    %271 = vector.extract_strided_slice %269 {offsets = [0, 32], sizes = [2, 32], strides = [1, 1]} : vector<2x128xf32> to vector<2x32xf32>
    %272 = vector.extract_strided_slice %265 {offsets = [0, 64], sizes = [2, 32], strides = [1, 1]} : vector<2x128xf32> to vector<2x32xf32>
    %273 = vector.extract_strided_slice %269 {offsets = [0, 96], sizes = [2, 32], strides = [1, 1]} : vector<2x128xf32> to vector<2x32xf32>
    %274 = arith.mulf %271, %239 : vector<2x32xf32>
    %275 = arith.mulf %270, %272 : vector<2x32xf32>
    %276 = arith.addf %274, %275 : vector<2x32xf32>
    %277 = math.tanh %276 : vector<2x32xf32>
    %278 = arith.mulf %273, %277 : vector<2x32xf32>
    %279 = arith.truncf %278 : vector<2x32xf32> to vector<2x32xbf16>
    %cst_81 = arith.constant dense<0.000000e+00> : vector<2x128xf32>
    %280 = tpu.matmul %279, %1, %cst_81 {dimension_numbers = #tpu.dot_dimension_numbers<[1], [0], [0], [1], [0, 0, 1, 1], [], []>} : vector<2x32xbf16>, vector<32x128xbf16>, vector<2x128xf32> -> vector<2x128xf32>
    %281 = vector.broadcast %5 : vector<1x128xf32> to vector<2x128xf32>
    %282 = arith.addf %280, %281 : vector<2x128xf32>
    %cst_82 = arith.constant dense<0.000000e+00> : vector<2x128xf32>
    %283 = tpu.matmul %262, %3, %cst_82 {dimension_numbers = #tpu.dot_dimension_numbers<[1], [0], [0], [1], [0, 0, 1, 1], [], []>} : vector<2x32xbf16>, vector<32x128xbf16>, vector<2x128xf32> -> vector<2x128xf32>
    %284 = arith.addf %245, %283 : vector<2x128xf32>
    %285 = math.tanh %284 : vector<2x128xf32>
    %cst_83 = arith.constant 5.000000e-01 : f32
    %286 = vector.broadcast %cst_83 : f32 to vector<2x128xf32>
    %287 = arith.mulf %286, %285 : vector<2x128xf32>
    %cst_84 = arith.constant 5.000000e-01 : f32
    %288 = vector.broadcast %cst_84 : f32 to vector<2x128xf32>
    %289 = arith.addf %287, %288 : vector<2x128xf32>
    %290 = vector.extract_strided_slice %289 {offsets = [0, 0], sizes = [2, 32], strides = [1, 1]} : vector<2x128xf32> to vector<2x32xf32>
    %291 = vector.extract_strided_slice %289 {offsets = [0, 32], sizes = [2, 32], strides = [1, 1]} : vector<2x128xf32> to vector<2x32xf32>
    %292 = vector.extract_strided_slice %285 {offsets = [0, 64], sizes = [2, 32], strides = [1, 1]} : vector<2x128xf32> to vector<2x32xf32>
    %293 = vector.extract_strided_slice %289 {offsets = [0, 96], sizes = [2, 32], strides = [1, 1]} : vector<2x128xf32> to vector<2x32xf32>
    %294 = arith.mulf %291, %259 : vector<2x32xf32>
    %295 = arith.mulf %290, %292 : vector<2x32xf32>
    %296 = arith.addf %294, %295 : vector<2x32xf32>
    %297 = math.tanh %296 : vector<2x32xf32>
    %298 = arith.mulf %293, %297 : vector<2x32xf32>
    %299 = arith.truncf %298 : vector<2x32xf32> to vector<2x32xbf16>
    %cst_85 = arith.constant dense<0.000000e+00> : vector<2x128xf32>
    %300 = tpu.matmul %279, %2, %cst_85 {dimension_numbers = #tpu.dot_dimension_numbers<[1], [0], [0], [1], [0, 0, 1, 1], [], []>} : vector<2x32xbf16>, vector<32x128xbf16>, vector<2x128xf32> -> vector<2x128xf32>
    %301 = arith.addf %53, %300 : vector<2x128xf32>
    %302 = math.tanh %301 : vector<2x128xf32>
    %cst_86 = arith.constant 5.000000e-01 : f32
    %303 = vector.broadcast %cst_86 : f32 to vector<2x128xf32>
    %304 = arith.mulf %303, %302 : vector<2x128xf32>
    %cst_87 = arith.constant 5.000000e-01 : f32
    %305 = vector.broadcast %cst_87 : f32 to vector<2x128xf32>
    %306 = arith.addf %304, %305 : vector<2x128xf32>
    %307 = vector.extract_strided_slice %306 {offsets = [0, 0], sizes = [2, 32], strides = [1, 1]} : vector<2x128xf32> to vector<2x32xf32>
    %308 = vector.extract_strided_slice %306 {offsets = [0, 32], sizes = [2, 32], strides = [1, 1]} : vector<2x128xf32> to vector<2x32xf32>
    %309 = vector.extract_strided_slice %302 {offsets = [0, 64], sizes = [2, 32], strides = [1, 1]} : vector<2x128xf32> to vector<2x32xf32>
    %310 = vector.extract_strided_slice %306 {offsets = [0, 96], sizes = [2, 32], strides = [1, 1]} : vector<2x128xf32> to vector<2x32xf32>
    %311 = arith.mulf %308, %276 : vector<2x32xf32>
    %312 = arith.mulf %307, %309 : vector<2x32xf32>
    %313 = arith.addf %311, %312 : vector<2x32xf32>
    %314 = math.tanh %313 : vector<2x32xf32>
    %315 = arith.mulf %310, %314 : vector<2x32xf32>
    %316 = arith.truncf %315 : vector<2x32xf32> to vector<2x32xbf16>
    %cst_88 = arith.constant dense<0.000000e+00> : vector<2x128xf32>
    %317 = tpu.matmul %316, %1, %cst_88 {dimension_numbers = #tpu.dot_dimension_numbers<[1], [0], [0], [1], [0, 0, 1, 1], [], []>} : vector<2x32xbf16>, vector<32x128xbf16>, vector<2x128xf32> -> vector<2x128xf32>
    %318 = vector.broadcast %5 : vector<1x128xf32> to vector<2x128xf32>
    %319 = arith.addf %317, %318 : vector<2x128xf32>
    %cst_89 = arith.constant dense<0.000000e+00> : vector<2x128xf32>
    %320 = tpu.matmul %299, %3, %cst_89 {dimension_numbers = #tpu.dot_dimension_numbers<[1], [0], [0], [1], [0, 0, 1, 1], [], []>} : vector<2x32xbf16>, vector<32x128xbf16>, vector<2x128xf32> -> vector<2x128xf32>
    %321 = arith.addf %282, %320 : vector<2x128xf32>
    %322 = math.tanh %321 : vector<2x128xf32>
    %cst_90 = arith.constant 5.000000e-01 : f32
    %323 = vector.broadcast %cst_90 : f32 to vector<2x128xf32>
    %324 = arith.mulf %323, %322 : vector<2x128xf32>
    %cst_91 = arith.constant 5.000000e-01 : f32
    %325 = vector.broadcast %cst_91 : f32 to vector<2x128xf32>
    %326 = arith.addf %324, %325 : vector<2x128xf32>
    %327 = vector.extract_strided_slice %326 {offsets = [0, 0], sizes = [2, 32], strides = [1, 1]} : vector<2x128xf32> to vector<2x32xf32>
    %328 = vector.extract_strided_slice %326 {offsets = [0, 32], sizes = [2, 32], strides = [1, 1]} : vector<2x128xf32> to vector<2x32xf32>
    %329 = vector.extract_strided_slice %322 {offsets = [0, 64], sizes = [2, 32], strides = [1, 1]} : vector<2x128xf32> to vector<2x32xf32>
    %330 = vector.extract_strided_slice %326 {offsets = [0, 96], sizes = [2, 32], strides = [1, 1]} : vector<2x128xf32> to vector<2x32xf32>
    %331 = arith.mulf %328, %296 : vector<2x32xf32>
    %332 = arith.mulf %327, %329 : vector<2x32xf32>
    %333 = arith.addf %331, %332 : vector<2x32xf32>
    %334 = math.tanh %333 : vector<2x32xf32>
    %335 = arith.mulf %330, %334 : vector<2x32xf32>
    %336 = arith.truncf %335 : vector<2x32xf32> to vector<2x32xbf16>
    %cst_92 = arith.constant dense<0.000000e+00> : vector<2x128xf32>
    %337 = tpu.matmul %336, %3, %cst_92 {dimension_numbers = #tpu.dot_dimension_numbers<[1], [0], [0], [1], [0, 0, 1, 1], [], []>} : vector<2x32xbf16>, vector<32x128xbf16>, vector<2x128xf32> -> vector<2x128xf32>
    %338 = arith.addf %319, %337 : vector<2x128xf32>
    %339 = math.tanh %338 : vector<2x128xf32>
    %cst_93 = arith.constant 5.000000e-01 : f32
    %340 = vector.broadcast %cst_93 : f32 to vector<2x128xf32>
    %341 = arith.mulf %340, %339 : vector<2x128xf32>
    %cst_94 = arith.constant 5.000000e-01 : f32
    %342 = vector.broadcast %cst_94 : f32 to vector<2x128xf32>
    %343 = arith.addf %341, %342 : vector<2x128xf32>
    %344 = vector.extract_strided_slice %343 {offsets = [0, 0], sizes = [2, 32], strides = [1, 1]} : vector<2x128xf32> to vector<2x32xf32>
    %345 = vector.extract_strided_slice %343 {offsets = [0, 32], sizes = [2, 32], strides = [1, 1]} : vector<2x128xf32> to vector<2x32xf32>
    %346 = vector.extract_strided_slice %339 {offsets = [0, 64], sizes = [2, 32], strides = [1, 1]} : vector<2x128xf32> to vector<2x32xf32>
    %347 = vector.extract_strided_slice %343 {offsets = [0, 96], sizes = [2, 32], strides = [1, 1]} : vector<2x128xf32> to vector<2x32xf32>
    %348 = arith.mulf %345, %333 : vector<2x32xf32>
    %349 = arith.mulf %344, %346 : vector<2x32xf32>
    %350 = arith.addf %348, %349 : vector<2x32xf32>
    %351 = math.tanh %350 : vector<2x32xf32>
    %352 = arith.mulf %347, %351 : vector<2x32xf32>
    %c0_95 = arith.constant 0 : index
    %c0_96 = arith.constant 0 : index
    %353 = vector.load %arg7[%c0_95, %c0_96] : memref<1x32xf32, #tpu.memory_space<vmem>>, vector<1x32xf32>
    %354 = vector.broadcast %353 : vector<1x32xf32> to vector<2x32xf32>
    %355 = arith.mulf %352, %354 : vector<2x32xf32>
    %cst_97 = arith.constant dense<0.000000e+00> : vector<2xf32>
    %356 = vector.multi_reduction <add>, %355, %cst_97 [1] : vector<2x32xf32> to vector<2xf32>
    %357 = vector.shape_cast %356 : vector<2xf32> to vector<2x1xf32>
    %c0_98 = arith.constant 0 : index
    %c0_99 = arith.constant 0 : index
    %358 = vector.load %arg8[%c0_98, %c0_99] : memref<2x1xf32, #tpu.memory_space<vmem>>, vector<2x1xf32>
    tpu.vector_store %arg8[%c0_98, %c0_99], %357 {strides = array<i32>} : memref<2x1xf32, #tpu.memory_space<vmem>>, vector<2x1xf32>,
    return
  }
}

</mosaic_0001>

<llo_original>
// kernel: model_forward.1
$region0: #{model_forward.1}
  #allocation0 [shape = 'u32[]', space=smem, size = 0x4, offset = 0x4, fixed_abs, tag = 'smem constant byte address 0x4 - core index']
  #allocation1 [shape = 'u32[144,128]{1,0:T(1,128)}', space=vmem, size = 0x12000, scoped, tag = 'internal scratch']
  %s0 = inlined_call_operand.vmem [shape: f32[8,2,4], index: 0, kind: input, shape index: {}]
  %s1 = inlined_call_operand.vmem [shape: bf16[4,128], index: 1, kind: input, shape index: {}]
  %s2 = inlined_call_operand.vmem [shape: bf16[32,128], index: 2, kind: input, shape index: {}]
  %s3 = inlined_call_operand.vmem [shape: f32[1,128], index: 3, kind: input, shape index: {}]
  %s4 = inlined_call_operand.vmem [shape: bf16[32,128], index: 4, kind: input, shape index: {}]
  %s5 = inlined_call_operand.hbm [shape: bf16[32,128], index: 5, kind: input, shape index: {}]
  %s6 = inlined_call_operand.vmem [shape: f32[1,128], index: 6, kind: input, shape index: {}]
  %s7 = inlined_call_operand.hbm [shape: f32[1,32], index: 7, kind: input, shape index: {}]
  %s8 = inlined_call_operand.vmem [shape: f32[2,1], index: 8, kind: output, shape index: {}]
  %s9 = sld [smem:[#allocation0]]
  $region50: #{model_forward.1} parent=0
    _
  %s11 = ssub.s32 1, %s9
  %s12 = scalar_select 0, %s11, %s9
  $region1: #{model_forward.1} parent=0
    #allocation2 [shape = 'u8[8192]{0}', space=vmem, size = 0x2000, scoped, tag = 'input window, operand 5, single buffered']
    #allocation3 [shape = 's32[1]{0}', space=sflag, size = 0x4, scoped, tag = 'scoped memory for model_forward.1']
    #allocation4 [shape = 'u8[512]{0}', space=vmem, size = 0x400, scoped, tag = 'input window, operand 7, single buffered']
    #allocation5 [shape = 's32[1]{0}', space=sflag, size = 0x4, scoped, tag = 'scoped memory for model_forward.1']
    %13 = vsyncpa [#allocation3], 0
    %14 = vsyncpa [#allocation5], 0
    // Predicated region
    $region2: #{model_forward.1} parent=1 // pred_check
      _
    $region3: #{model_forward.1} parent=1 // pred_check_branch
      %16 = sbr.rel (0) target = $region5
    $region4: #{model_forward.1} parent=1 // pred_region
      _
    $region5: #{model_forward.1} parent=1 // pred_fallthru
      _
    // Predicated region
    $region6: #{model_forward.1} parent=1 // pred_check
      _
    $region7: #{model_forward.1} parent=1 // pred_check_branch
      %18 = sbr.rel (0) target = $region9
    $region8: #{model_forward.1} parent=1 // pred_region
      _
    $region9: #{model_forward.1} parent=1 // pred_fallthru
      _
    // Predicated region
    $region10: #{model_forward.1} parent=1 // pred_check
      _
    $region11: #{model_forward.1} parent=1 // pred_check_branch
      %20 = sbr.rel (0) target = $region13
    $region12: #{model_forward.1} parent=1 // pred_region
      _
    $region13: #{model_forward.1} parent=1 // pred_fallthru
      _
    // Predicated region
    $region14: #{model_forward.1} parent=1 // pred_check
      _
    $region15: #{model_forward.1} parent=1 // pred_check_branch
      %22 = sbr.rel (0) target = $region17
    $region16: #{model_forward.1} parent=1 // pred_region
      _
    $region17: #{model_forward.1} parent=1 // pred_fallthru
      _
    // Predicated region
    $region18: #{model_forward.1} parent=1 // pred_check
      _
    $region19: #{model_forward.1} parent=1 // pred_check_branch
      %24 = sbr.rel (0) target = $region21
    $region20: #{model_forward.1} parent=1 // pred_region
      _
    $region21: #{model_forward.1} parent=1 // pred_fallthru
      _
    // Predicated region
    $region22: #{model_forward.1} parent=1 // pred_check
      _
    $region23: #{model_forward.1} parent=1 // pred_check_branch
      %26 = sbr.rel (0) target = $region25
    $region24: #{model_forward.1} parent=1 // pred_region
      %s28 = ssub.s32 256, 256
      %29 = vsyncadd [#allocation3], %s28
      %s30 = sshll.u32 [#allocation2], 4
      %s31 = int_to_ptr.vmem [resolvable:$true] %s30
      %36 = dma.hbm_to_vmem [thread:$0]  %s5, 256, %s31, [#allocation3], 64, 64, 4
    $region25: #{model_forward.1} parent=1 // pred_fallthru
      _
    // Predicated region
    $region26: #{model_forward.1} parent=1 // pred_check
      _
    $region27: #{model_forward.1} parent=1 // pred_check_branch
      %38 = sbr.rel (0) target = $region29
    $region28: #{model_forward.1} parent=1 // pred_region
      _
    $region29: #{model_forward.1} parent=1 // pred_fallthru
      _
    // Predicated region
    $region30: #{model_forward.1} parent=1 // pred_check
      _
    $region31: #{model_forward.1} parent=1 // pred_check_branch
      %40 = sbr.rel (0) target = $region33
    $region32: #{model_forward.1} parent=1 // pred_region
      %s42 = ssub.s32 16, 16
      %43 = vsyncadd [#allocation5], %s42
      %s45 = sshll.u32 [#allocation4], 4
      %s46 = int_to_ptr.vmem [resolvable:$true] %s45
      %48 = dma.hbm_to_vmem [thread:$0]  %s7, 16, %s46, [#allocation5]
    $region33: #{model_forward.1} parent=1 // pred_fallthru
      _
    // Predicated region
    $region34: #{model_forward.1} parent=1 // pred_check
      _
    $region35: #{model_forward.1} parent=1 // pred_check_branch
      %50 = sbr.rel (0) target = $region37
    $region36: #{model_forward.1} parent=1 // pred_region
      %51 = dma.done [#allocation3], 256
    $region37: #{model_forward.1} parent=1 // pred_fallthru
      _
    // Predicated region
    $region38: #{model_forward.1} parent=1 // pred_check
      _
    $region39: #{model_forward.1} parent=1 // pred_check_branch
      %53 = sbr.rel (0) target = $region41
    $region40: #{model_forward.1} parent=1 // pred_region
      %54 = dma.done [#allocation5], 16
    $region41: #{model_forward.1} parent=1 // pred_fallthru
      _
    %v56 = vld [vmem:[%s1] sm:$0x3]
    %v57 = vld [vmem:[%s4] sm:$0xf]
    %v58 = vld [vmem:[%s4 + $0x4] sm:$0xf]
    %v59 = vld [vmem:[%s4 + $0x8] sm:$0xf]
    %v60 = vld [vmem:[%s4 + $0xc] sm:$0xf]
    %v61 = vld [vmem:[%s2] sm:$0xf]
    %v62 = vld [vmem:[%s2 + $0x4] sm:$0xf]
    %v63 = vld [vmem:[%s2 + $0x8] sm:$0xf]
    %v64 = vld [vmem:[%s2 + $0xc] sm:$0xf]
    %v65 = vld [vmem:[#allocation2] sm:$0xf]
    %v66 = vld [vmem:[#allocation2 + $0x4] sm:$0xf]
    %v67 = vld [vmem:[#allocation2 + $0x8] sm:$0xf]
    %v68 = vld [vmem:[#allocation2 + $0xc] sm:$0xf]
    %v69 = vld [vmem:[%s3] sm:$0x1]
    %v70 = vld [vmem:[%s6] sm:$0x1]
    %v71 = vld [vmem:[%s0] sm:$0x3]
    %v72 = vpack.c.bf16 %v71, %v71
    %v74 = vlaneseq
    %v75 = vshrl.u32 %v74, 7
    %v76 = vsub.s32 0, %v75
    %v77 = vrot.slane %v69, %v76
    %vm79 = vcmask 31744
    %v81 = vsel %vm79, %v72, 0
    %vm83 = vcmask 1041408
    %v85 = vsel %vm83, %v56, 0
    %87 = vmatprep.subr.bf16.mxu0 0
    %88 = vmatpush1.bf16.msra.mxu0 %v85
    %89 = vmatprep.subr.bf16.mxu0 0
    %90 = vmatpush1.bf16.msra.mxu0 0
    %91 = vmatprep.subr.bf16.mxu0 0
    %92 = vmatpush1.bf16.msra.mxu0 0
    %93 = vmatprep.subr.bf16.mxu0 0
    %94 = vmatpush1.bf16.msra.mxu0 0
    %95 = vmatprep.subr.bf16.mxu0 0
    %96 = vmatpush1.bf16.msra.mxu0 0
    %97 = vmatprep.subr.bf16.mxu0 0
    %98 = vmatpush1.bf16.msra.mxu0 0
    %99 = vmatprep.subr.bf16.mxu0 0
    %100 = vmatpush1.bf16.msra.mxu0 0
    %101 = vmatprep.subr.bf16.mxu0 0
    %102 = vmatpush1.bf16.msra.mxu0 0
    %103 = vmatprep.subr.bf16.mxu0 0
    %104 = vmatpush1.bf16.msra.mxu0 0
    %105 = vmatprep.subr.bf16.mxu0 0
    %106 = vmatpush1.bf16.msra.mxu0 0
    %107 = vmatprep.subr.bf16.mxu0 0
    %108 = vmatpush1.bf16.msra.mxu0 0
    %109 = vmatprep.subr.bf16.mxu0 0
    %110 = vmatpush1.bf16.msra.mxu0 0
    %111 = vmatprep.subr.bf16.mxu0 0
    %112 = vmatpush1.bf16.msra.mxu0 0
    %113 = vmatprep.subr.bf16.mxu0 0
    %114 = vmatpush1.bf16.msra.mxu0 0
    %115 = vmatprep.subr.bf16.mxu0 0
    %116 = vmatpush1.bf16.msra.mxu0 0
    %117 = vmatprep.subr.bf16.mxu0 0
    %118 = vmatpush1.bf16.msra.mxu0 0
    %119 = vmatprep.mubr.bf16.mxu0 0
    %120 = vmatmul.mubr.bf16.gmra.mrb[0].mxu0 %v81
    %v121 = vpop.f32.mrb[0].mxu0
    %v122 = vadd.f32 %v77, %v121
    %v123 = vpop.f32.mrb[0].mxu0
    %v124 = vpop.f32.mrb[0].mxu0
    %v125 = vpop.f32.mrb[0].mxu0
    %126 = vdwg.mxu0
    %s127 = scalar_lea.vmem %s0, 2
    %v128 = vld [vmem:[%s127] sm:$0x3]
    %v129 = vpack.c.bf16 %v128, %v128
    %v131 = vsel %vm79, %v129, 0
    %133 = vmatprep.subr.bf16.mxu0 0
    %134 = vmatpush1.bf16.msra.mxu0 %v85
    %135 = vmatprep.subr.bf16.mxu0 0
    %136 = vmatpush1.bf16.msra.mxu0 0
    %137 = vmatprep.subr.bf16.mxu0 0
    %138 = vmatpush1.bf16.msra.mxu0 0
    %139 = vmatprep.subr.bf16.mxu0 0
    %140 = vmatpush1.bf16.msra.mxu0 0
    %141 = vmatprep.subr.bf16.mxu0 0
    %142 = vmatpush1.bf16.msra.mxu0 0
    %143 = vmatprep.subr.bf16.mxu0 0
    %144 = vmatpush1.bf16.msra.mxu0 0
    %145 = vmatprep.subr.bf16.mxu0 0
    %146 = vmatpush1.bf16.msra.mxu0 0
    %147 = vmatprep.subr.bf16.mxu0 0
    %148 = vmatpush1.bf16.msra.mxu0 0
    %149 = vmatprep.subr.bf16.mxu0 0
    %150 = vmatpush1.bf16.msra.mxu0 0
    %151 = vmatprep.subr.bf16.mxu0 0
    %152 = vmatpush1.bf16.msra.mxu0 0
    %153 = vmatprep.subr.bf16.mxu0 0
    %154 = vmatpush1.bf16.msra.mxu0 0
    %155 = vmatprep.subr.bf16.mxu0 0
    %156 = vmatpush1.bf16.msra.mxu0 0
    %157 = vmatprep.subr.bf16.mxu0 0
    %158 = vmatpush1.bf16.msra.mxu0 0
    %159 = vmatprep.subr.bf16.mxu0 0
    %160 = vmatpush1.bf16.msra.mxu0 0
    %161 = vmatprep.subr.bf16.mxu0 0
    %162 = vmatpush1.bf16.msra.mxu0 0
    %163 = vmatprep.subr.bf16.mxu0 0
    %164 = vmatpush1.bf16.msra.mxu0 0
    %165 = vmatprep.mubr.bf16.mxu0 0
    %166 = vmatmul.mubr.bf16.gmra.mrb[0].mxu0 %v131
    %v167 = vpop.f32.mrb[0].mxu0
    %v168 = vadd.f32 %v77, %v167
    %v169 = vpop.f32.mrb[0].mxu0
    %v170 = vpop.f32.mrb[0].mxu0
    %v171 = vpop.f32.mrb[0].mxu0
    %172 = vdwg.mxu0
    %s173 = scalar_lea.vmem %s0, 4
    %v174 = vld [vmem:[%s173] sm:$0x3]
    %v175 = vpack.c.bf16 %v174, %v174
    %v177 = vsel %vm79, %v175, 0
    %179 = vmatprep.subr.bf16.mxu0 0
    %180 = vmatpush1.bf16.msra.mxu0 %v85
    %181 = vmatprep.subr.bf16.mxu0 0
    %182 = vmatpush1.bf16.msra.mxu0 0
    %183 = vmatprep.subr.bf16.mxu0 0
    %184 = vmatpush1.bf16.msra.mxu0 0
    %185 = vmatprep.subr.bf16.mxu0 0
    %186 = vmatpush1.bf16.msra.mxu0 0
    %187 = vmatprep.subr.bf16.mxu0 0
    %188 = vmatpush1.bf16.msra.mxu0 0
    %189 = vmatprep.subr.bf16.mxu0 0
    %190 = vmatpush1.bf16.msra.mxu0 0
    %191 = vmatprep.subr.bf16.mxu0 0
    %192 = vmatpush1.bf16.msra.mxu0 0
    %193 = vmatprep.subr.bf16.mxu0 0
    %194 = vmatpush1.bf16.msra.mxu0 0
    %195 = vmatprep.subr.bf16.mxu0 0
    %196 = vmatpush1.bf16.msra.mxu0 0
    %197 = vmatprep.subr.bf16.mxu0 0
    %198 = vmatpush1.bf16.msra.mxu0 0
    %199 = vmatprep.subr.bf16.mxu0 0
    %200 = vmatpush1.bf16.msra.mxu0 0
    %201 = vmatprep.subr.bf16.mxu0 0
    %202 = vmatpush1.bf16.msra.mxu0 0
    %203 = vmatprep.subr.bf16.mxu0 0
    %204 = vmatpush1.bf16.msra.mxu0 0
    %205 = vmatprep.subr.bf16.mxu0 0
    %206 = vmatpush1.bf16.msra.mxu0 0
    %207 = vmatprep.subr.bf16.mxu0 0
    %208 = vmatpush1.bf16.msra.mxu0 0
    %209 = vmatprep.subr.bf16.mxu0 0
    %210 = vmatpush1.bf16.msra.mxu0 0
    %211 = vmatprep.mubr.bf16.mxu0 0
    %212 = vmatmul.mubr.bf16.gmra.mrb[0].mxu0 %v177
    %v213 = vpop.f32.mrb[0].mxu0
    %v214 = vadd.f32 %v77, %v213
    %v215 = vpop.f32.mrb[0].mxu0
    %v216 = vpop.f32.mrb[0].mxu0
    %v217 = vpop.f32.mrb[0].mxu0
    %218 = vdwg.mxu0
    %s219 = scalar_lea.vmem %s0, 6
    %v220 = vld [vmem:[%s219] sm:$0x3]
    %v221 = vpack.c.bf16 %v220, %v220
    %v223 = vsel %vm79, %v221, 0
    %225 = vmatprep.subr.bf16.mxu0 0
    %226 = vmatpush1.bf16.msra.mxu0 %v85
    %227 = vmatprep.subr.bf16.mxu0 0
    %228 = vmatpush1.bf16.msra.mxu0 0
    %229 = vmatprep.subr.bf16.mxu0 0
    %230 = vmatpush1.bf16.msra.mxu0 0
    %231 = vmatprep.subr.bf16.mxu0 0
    %232 = vmatpush1.bf16.msra.mxu0 0
    %233 = vmatprep.subr.bf16.mxu0 0
    %234 = vmatpush1.bf16.msra.mxu0 0
    %235 = vmatprep.subr.bf16.mxu0 0
    %236 = vmatpush1.bf16.msra.mxu0 0
    %237 = vmatprep.subr.bf16.mxu0 0
    %238 = vmatpush1.bf16.msra.mxu0 0
    %239 = vmatprep.subr.bf16.mxu0 0
    %240 = vmatpush1.bf16.msra.mxu0 0
    %241 = vmatprep.subr.bf16.mxu0 0
    %242 = vmatpush1.bf16.msra.mxu0 0
    %243 = vmatprep.subr.bf16.mxu0 0
    %244 = vmatpush1.bf16.msra.mxu0 0
    %245 = vmatprep.subr.bf16.mxu0 0
    %246 = vmatpush1.bf16.msra.mxu0 0
    %247 = vmatprep.subr.bf16.mxu0 0
    %248 = vmatpush1.bf16.msra.mxu0 0
    %249 = vmatprep.subr.bf16.mxu0 0
    %250 = vmatpush1.bf16.msra.mxu0 0
    %251 = vmatprep.subr.bf16.mxu0 0
    %252 = vmatpush1.bf16.msra.mxu0 0
    %253 = vmatprep.subr.bf16.mxu0 0
    %254 = vmatpush1.bf16.msra.mxu0 0
    %255 = vmatprep.subr.bf16.mxu0 0
    %256 = vmatpush1.bf16.msra.mxu0 0
    %257 = vmatprep.mubr.bf16.mxu0 0
    %258 = vmatmul.mubr.bf16.gmra.mrb[0].mxu0 %v223
    %v259 = vpop.f32.mrb[0].mxu0
    %v260 = vadd.f32 %v77, %v259
    %v261 = vpop.f32.mrb[0].mxu0
    %v262 = vpop.f32.mrb[0].mxu0
    %v263 = vpop.f32.mrb[0].mxu0
    %264 = vdwg.mxu0
    %s265 = scalar_lea.vmem %s0, 8
    %v266 = vld [vmem:[%s265] sm:$0x3]
    %v267 = vpack.c.bf16 %v266, %v266
    %v269 = vsel %vm79, %v267, 0
    %271 = vmatprep.subr.bf16.mxu0 0
    %272 = vmatpush1.bf16.msra.mxu0 %v85
    %273 = vmatprep.subr.bf16.mxu0 0
    %274 = vmatpush1.bf16.msra.mxu0 0
    %275 = vmatprep.subr.bf16.mxu0 0
    %276 = vmatpush1.bf16.msra.mxu0 0
    %277 = vmatprep.subr.bf16.mxu0 0
    %278 = vmatpush1.bf16.msra.mxu0 0
    %279 = vmatprep.subr.bf16.mxu0 0
    %280 = vmatpush1.bf16.msra.mxu0 0
    %281 = vmatprep.subr.bf16.mxu0 0
    %282 = vmatpush1.bf16.msra.mxu0 0
    %283 = vmatprep.subr.bf16.mxu0 0
    %284 = vmatpush1.bf16.msra.mxu0 0
    %285 = vmatprep.subr.bf16.mxu0 0
    %286 = vmatpush1.bf16.msra.mxu0 0
    %287 = vmatprep.subr.bf16.mxu0 0
    %288 = vmatpush1.bf16.msra.mxu0 0
    %289 = vmatprep.subr.bf16.mxu0 0
    %290 = vmatpush1.bf16.msra.mxu0 0
    %291 = vmatprep.subr.bf16.mxu0 0
    %292 = vmatpush1.bf16.msra.mxu0 0
    %293 = vmatprep.subr.bf16.mxu0 0
    %294 = vmatpush1.bf16.msra.mxu0 0
    %295 = vmatprep.subr.bf16.mxu0 0
    %296 = vmatpush1.bf16.msra.mxu0 0
    %297 = vmatprep.subr.bf16.mxu0 0
    %298 = vmatpush1.bf16.msra.mxu0 0
    %299 = vmatprep.subr.bf16.mxu0 0
    %300 = vmatpush1.bf16.msra.mxu0 0
    %301 = vmatprep.subr.bf16.mxu0 0
    %302 = vmatpush1.bf16.msra.mxu0 0
    %303 = vmatprep.mubr.bf16.mxu0 0
    %304 = vmatmul.mubr.bf16.gmra.mrb[0].mxu0 %v269
    %v305 = vpop.f32.mrb[0].mxu0
    %v306 = vadd.f32 %v77, %v305
    %v307 = vpop.f32.mrb[0].mxu0
    %v308 = vpop.f32.mrb[0].mxu0
    %v309 = vpop.f32.mrb[0].mxu0
    %310 = vdwg.mxu0
    %s311 = scalar_lea.vmem %s0, 10
    %v312 = vld [vmem:[%s311] sm:$0x3]
    %v313 = vpack.c.bf16 %v312, %v312
    %v315 = vsel %vm79, %v313, 0
    %317 = vmatprep.subr.bf16.mxu0 0
    %318 = vmatpush1.bf16.msra.mxu0 %v85
    %319 = vmatprep.subr.bf16.mxu0 0
    %320 = vmatpush1.bf16.msra.mxu0 0
    %321 = vmatprep.subr.bf16.mxu0 0
    %322 = vmatpush1.bf16.msra.mxu0 0
    %323 = vmatprep.subr.bf16.mxu0 0
    %324 = vmatpush1.bf16.msra.mxu0 0
    %325 = vmatprep.subr.bf16.mxu0 0
    %326 = vmatpush1.bf16.msra.mxu0 0
    %327 = vmatprep.subr.bf16.mxu0 0
    %328 = vmatpush1.bf16.msra.mxu0 0
    %329 = vmatprep.subr.bf16.mxu0 0
    %330 = vmatpush1.bf16.msra.mxu0 0
    %331 = vmatprep.subr.bf16.mxu0 0
    %332 = vmatpush1.bf16.msra.mxu0 0
    %333 = vmatprep.subr.bf16.mxu0 0
    %334 = vmatpush1.bf16.msra.mxu0 0
    %335 = vmatprep.subr.bf16.mxu0 0
    %336 = vmatpush1.bf16.msra.mxu0 0
    %337 = vmatprep.subr.bf16.mxu0 0
    %338 = vmatpush1.bf16.msra.mxu0 0
    %339 = vmatprep.subr.bf16.mxu0 0
    %340 = vmatpush1.bf16.msra.mxu0 0
    %341 = vmatprep.subr.bf16.mxu0 0
    %342 = vmatpush1.bf16.msra.mxu0 0
    %343 = vmatprep.subr.bf16.mxu0 0
    %344 = vmatpush1.bf16.msra.mxu0 0
    %345 = vmatprep.subr.bf16.mxu0 0
    %346 = vmatpush1.bf16.msra.mxu0 0
    %347 = vmatprep.subr.bf16.mxu0 0
    %348 = vmatpush1.bf16.msra.mxu0 0
    %349 = vmatprep.mubr.bf16.mxu0 0
    %350 = vmatmul.mubr.bf16.gmra.mrb[0].mxu0 %v315
    %v351 = vpop.f32.mrb[0].mxu0
    %v352 = vadd.f32 %v77, %v351
    %v353 = vpop.f32.mrb[0].mxu0
    %v354 = vpop.f32.mrb[0].mxu0
    %v355 = vpop.f32.mrb[0].mxu0
    %356 = vdwg.mxu0
    %s357 = scalar_lea.vmem %s0, 12
    %v358 = vld [vmem:[%s357] sm:$0x3]
    %v359 = vpack.c.bf16 %v358, %v358
    %v361 = vsel %vm79, %v359, 0
    %363 = vmatprep.subr.bf16.mxu0 0
    %364 = vmatpush1.bf16.msra.mxu0 %v85
    %365 = vmatprep.subr.bf16.mxu0 0
    %366 = vmatpush1.bf16.msra.mxu0 0
    %367 = vmatprep.subr.bf16.mxu0 0
    %368 = vmatpush1.bf16.msra.mxu0 0
    %369 = vmatprep.subr.bf16.mxu0 0
    %370 = vmatpush1.bf16.msra.mxu0 0
    %371 = vmatprep.subr.bf16.mxu0 0
    %372 = vmatpush1.bf16.msra.mxu0 0
    %373 = vmatprep.subr.bf16.mxu0 0
    %374 = vmatpush1.bf16.msra.mxu0 0
    %375 = vmatprep.subr.bf16.mxu0 0
    %376 = vmatpush1.bf16.msra.mxu0 0
    %377 = vmatprep.subr.bf16.mxu0 0
    %378 = vmatpush1.bf16.msra.mxu0 0
    %379 = vmatprep.subr.bf16.mxu0 0
    %380 = vmatpush1.bf16.msra.mxu0 0
    %381 = vmatprep.subr.bf16.mxu0 0
    %382 = vmatpush1.bf16.msra.mxu0 0
    %383 = vmatprep.subr.bf16.mxu0 0
    %384 = vmatpush1.bf16.msra.mxu0 0
    %385 = vmatprep.subr.bf16.mxu0 0
    %386 = vmatpush1.bf16.msra.mxu0 0
    %387 = vmatprep.subr.bf16.mxu0 0
    %388 = vmatpush1.bf16.msra.mxu0 0
    %389 = vmatprep.subr.bf16.mxu0 0
    %390 = vmatpush1.bf16.msra.mxu0 0
    %391 = vmatprep.subr.bf16.mxu0 0
    %392 = vmatpush1.bf16.msra.mxu0 0
    %393 = vmatprep.subr.bf16.mxu0 0
    %394 = vmatpush1.bf16.msra.mxu0 0
    %395 = vmatprep.mubr.bf16.mxu0 0
    %396 = vmatmul.mubr.bf16.gmra.mrb[0].mxu0 %v361
    %v397 = vpop.f32.mrb[0].mxu0
    %v398 = vadd.f32 %v77, %v397
    %v399 = vpop.f32.mrb[0].mxu0
    %v400 = vpop.f32.mrb[0].mxu0
    %v401 = vpop.f32.mrb[0].mxu0
    %402 = vdwg.mxu0
    %s403 = scalar_lea.vmem %s0, 14
    %v404 = vld [vmem:[%s403] sm:$0x3]
    %v405 = vpack.c.bf16 %v404, %v404
    %v407 = vsel %vm79, %v405, 0
    %409 = vmatprep.subr.bf16.mxu0 0
    %410 = vmatpush1.bf16.msra.mxu0 %v85
    %411 = vmatprep.subr.bf16.mxu0 0
    %412 = vmatpush1.bf16.msra.mxu0 0
    %413 = vmatprep.subr.bf16.mxu0 0
    %414 = vmatpush1.bf16.msra.mxu0 0
    %415 = vmatprep.subr.bf16.mxu0 0
    %416 = vmatpush1.bf16.msra.mxu0 0
    %417 = vmatprep.subr.bf16.mxu0 0
    %418 = vmatpush1.bf16.msra.mxu0 0
    %419 = vmatprep.subr.bf16.mxu0 0
    %420 = vmatpush1.bf16.msra.mxu0 0
    %421 = vmatprep.subr.bf16.mxu0 0
    %422 = vmatpush1.bf16.msra.mxu0 0
    %423 = vmatprep.subr.bf16.mxu0 0
    %424 = vmatpush1.bf16.msra.mxu0 0
    %425 = vmatprep.subr.bf16.mxu0 0
    %426 = vmatpush1.bf16.msra.mxu0 0
    %427 = vmatprep.subr.bf16.mxu0 0
    %428 = vmatpush1.bf16.msra.mxu0 0
    %429 = vmatprep.subr.bf16.mxu0 0
    %430 = vmatpush1.bf16.msra.mxu0 0
    %431 = vmatprep.subr.bf16.mxu0 0
    %432 = vmatpush1.bf16.msra.mxu0 0
    %433 = vmatprep.subr.bf16.mxu0 0
    %434 = vmatpush1.bf16.msra.mxu0 0
    %435 = vmatprep.subr.bf16.mxu0 0
    %436 = vmatpush1.bf16.msra.mxu0 0
    %437 = vmatprep.subr.bf16.mxu0 0
    %438 = vmatpush1.bf16.msra.mxu0 0
    %439 = vmatprep.subr.bf16.mxu0 0
    %440 = vmatpush1.bf16.msra.mxu0 0
    %441 = vmatprep.mubr.bf16.mxu0 0
    %442 = vmatmul.mubr.bf16.gmra.mrb[0].mxu0 %v407
    %v443 = vpop.f32.mrb[0].mxu0
    %v444 = vadd.f32 %v77, %v443
    %v445 = vpop.f32.mrb[0].mxu0
    %v446 = vpop.f32.mrb[0].mxu0
    %v447 = vpop.f32.mrb[0].mxu0
    %448 = vdwg.mxu0
    %v453 = vunpack.c.l.b16 %v61
    %v454 = vunpack.c.l.b16 %v62
    %v455 = vunpack.c.l.b16 %v63
    %v456 = vunpack.c.l.b16 %v64
    %v457 = vpack.c.b16 %v454, %v453
    %v458 = vpack.c.b16 %v456, %v455
    %vm461 = vcmask 261120
    %v463 = vsel %vm461, 0, 0
    %465 = vmatprep.subr.bf16.mxu0 0
    %466 = vmatpush1.bf16.msra.mxu0 %v457
    %467 = vmatprep.subr.bf16.mxu0 0
    %468 = vmatpush1.bf16.msra.mxu0 %v458
    %469 = vmatprep.subr.bf16.mxu0 0
    %470 = vmatpush1.bf16.msra.mxu0 0
    %471 = vmatprep.subr.bf16.mxu0 0
    %472 = vmatpush1.bf16.msra.mxu0 0
    %473 = vmatprep.subr.bf16.mxu0 0
    %474 = vmatpush1.bf16.msra.mxu0 0
    %475 = vmatprep.subr.bf16.mxu0 0
    %476 = vmatpush1.bf16.msra.mxu0 0
    %477 = vmatprep.subr.bf16.mxu0 0
    %478 = vmatpush1.bf16.msra.mxu0 0
    %479 = vmatprep.subr.bf16.mxu0 0
    %480 = vmatpush1.bf16.msra.mxu0 0
    %481 = vmatprep.subr.bf16.mxu0 0
    %482 = vmatpush1.bf16.msra.mxu0 0
    %483 = vmatprep.subr.bf16.mxu0 0
    %484 = vmatpush1.bf16.msra.mxu0 0
    %485 = vmatprep.subr.bf16.mxu0 0
    %486 = vmatpush1.bf16.msra.mxu0 0
    %487 = vmatprep.subr.bf16.mxu0 0
    %488 = vmatpush1.bf16.msra.mxu0 0
    %489 = vmatprep.subr.bf16.mxu0 0
    %490 = vmatpush1.bf16.msra.mxu0 0
    %491 = vmatprep.subr.bf16.mxu0 0
    %492 = vmatpush1.bf16.msra.mxu0 0
    %493 = vmatprep.subr.bf16.mxu0 0
    %494 = vmatpush1.bf16.msra.mxu0 0
    %495 = vmatprep.subr.bf16.mxu0 0
    %496 = vmatpush1.bf16.msra.mxu0 0
    %497 = vmatprep.mubr.bf16.mxu0 0
    %498 = vmatmul.mubr.bf16.gmra.mrb[0].mxu0 %v463
    %v499 = vpop.f32.mrb[0].mxu0
    %v500 = vadd.f32 0.0, %v499
    %v501 = vpop.f32.mrb[0].mxu0
    %v502 = vpop.f32.mrb[0].mxu0
    %v503 = vpop.f32.mrb[0].mxu0
    %504 = vdwg.mxu0
    %v505 = vadd.f32 %v122, %v500
    %v506 = vtanh.pop %v505
    %v507 = vmul.f32 %v506, 0.5
    %v508 = vadd.f32 %v507, 0.5
    %v509 = vmul.f32 %v508, 0.0
    %511 = vrot.lane.b32.xlu0 %v506, 64
    %v512 = vpop.permute.xlu0 %511
    %v514 = vmul.f32 %v508, %v512
    %516 = vrot.lane.b32.xlu0 %v514, 32
    %v517 = vpop.permute.xlu0 %516
    %v519 = vadd.f32 %v509, %v517
    %v520 = vtanh.pop %v519
    %522 = vrot.lane.b32.xlu0 %v520, 64
    %v523 = vpop.permute.xlu0 %522
    %v525 = vmul.f32 %v508, %v523
    %v526 = vpack.c.bf16 %v525, %v525
    %v528 = vlaneseq
    %v529 = vshrl.u32 %v528, 7
    %v530 = vsub.s32 0, %v529
    %v531 = vrot.slane %v70, %v530
    %534 = vrot.lane.b32.xlu0 %v526, 32
    %v535 = vpop.permute.xlu0 %534
    %v540 = vunpack.c.l.b16 %v57
    %v541 = vunpack.c.l.b16 %v58
    %v542 = vunpack.c.l.b16 %v59
    %v543 = vunpack.c.l.b16 %v60
    %v544 = vpack.c.b16 %v541, %v540
    %v545 = vpack.c.b16 %v543, %v542
    %v549 = vsel %vm461, %v535, 0
    %551 = vmatprep.subr.bf16.mxu0 0
    %552 = vmatpush1.bf16.msra.mxu0 %v544
    %553 = vmatprep.subr.bf16.mxu0 0
    %554 = vmatpush1.bf16.msra.mxu0 %v545
    %555 = vmatprep.subr.bf16.mxu0 0
    %556 = vmatpush1.bf16.msra.mxu0 0
    %557 = vmatprep.subr.bf16.mxu0 0
    %558 = vmatpush1.bf16.msra.mxu0 0
    %559 = vmatprep.subr.bf16.mxu0 0
    %560 = vmatpush1.bf16.msra.mxu0 0
    %561 = vmatprep.subr.bf16.mxu0 0
    %562 = vmatpush1.bf16.msra.mxu0 0
    %563 = vmatprep.subr.bf16.mxu0 0
    %564 = vmatpush1.bf16.msra.mxu0 0
    %565 = vmatprep.subr.bf16.mxu0 0
    %566 = vmatpush1.bf16.msra.mxu0 0
    %567 = vmatprep.subr.bf16.mxu0 0
    %568 = vmatpush1.bf16.msra.mxu0 0
    %569 = vmatprep.subr.bf16.mxu0 0
    %570 = vmatpush1.bf16.msra.mxu0 0
    %571 = vmatprep.subr.bf16.mxu0 0
    %572 = vmatpush1.bf16.msra.mxu0 0
    %573 = vmatprep.subr.bf16.mxu0 0
    %574 = vmatpush1.bf16.msra.mxu0 0
    %575 = vmatprep.subr.bf16.mxu0 0
    %576 = vmatpush1.bf16.msra.mxu0 0
    %577 = vmatprep.subr.bf16.mxu0 0
    %578 = vmatpush1.bf16.msra.mxu0 0
    %579 = vmatprep.subr.bf16.mxu0 0
    %580 = vmatpush1.bf16.msra.mxu0 0
    %581 = vmatprep.subr.bf16.mxu0 0
    %582 = vmatpush1.bf16.msra.mxu0 0
    %583 = vmatprep.mubr.bf16.mxu0 0
    %584 = vmatmul.mubr.bf16.gmra.mrb[0].mxu0 %v549
    %v585 = vpop.f32.mrb[0].mxu0
    %v586 = vadd.f32 %v531, %v585
    %v587 = vpop.f32.mrb[0].mxu0
    %v588 = vpop.f32.mrb[0].mxu0
    %v589 = vpop.f32.mrb[0].mxu0
    %590 = vdwg.mxu0
    %591 = vmatprep.subr.bf16.mxu0 0
    %592 = vmatpush1.bf16.msra.mxu0 %v457
    %593 = vmatprep.subr.bf16.mxu0 0
    %594 = vmatpush1.bf16.msra.mxu0 %v458
    %595 = vmatprep.subr.bf16.mxu0 0
    %596 = vmatpush1.bf16.msra.mxu0 0
    %597 = vmatprep.subr.bf16.mxu0 0
    %598 = vmatpush1.bf16.msra.mxu0 0
    %599 = vmatprep.subr.bf16.mxu0 0
    %600 = vmatpush1.bf16.msra.mxu0 0
    %601 = vmatprep.subr.bf16.mxu0 0
    %602 = vmatpush1.bf16.msra.mxu0 0
    %603 = vmatprep.subr.bf16.mxu0 0
    %604 = vmatpush1.bf16.msra.mxu0 0
    %605 = vmatprep.subr.bf16.mxu0 0
    %606 = vmatpush1.bf16.msra.mxu0 0
    %607 = vmatprep.subr.bf16.mxu0 0
    %608 = vmatpush1.bf16.msra.mxu0 0
    %609 = vmatprep.subr.bf16.mxu0 0
    %610 = vmatpush1.bf16.msra.mxu0 0
    %611 = vmatprep.subr.bf16.mxu0 0
    %612 = vmatpush1.bf16.msra.mxu0 0
    %613 = vmatprep.subr.bf16.mxu0 0
    %614 = vmatpush1.bf16.msra.mxu0 0
    %615 = vmatprep.subr.bf16.mxu0 0
    %616 = vmatpush1.bf16.msra.mxu0 0
    %617 = vmatprep.subr.bf16.mxu0 0
    %618 = vmatpush1.bf16.msra.mxu0 0
    %619 = vmatprep.subr.bf16.mxu0 0
    %620 = vmatpush1.bf16.msra.mxu0 0
    %621 = vmatprep.subr.bf16.mxu0 0
    %622 = vmatpush1.bf16.msra.mxu0 0
    %623 = vmatprep.mubr.bf16.mxu0 0
    %624 = vmatmul.mubr.bf16.gmra.mrb[0].mxu0 %v549
    %v625 = vpop.f32.mrb[0].mxu0
    %v626 = vadd.f32 0.0, %v625
    %v627 = vpop.f32.mrb[0].mxu0
    %v628 = vpop.f32.mrb[0].mxu0
    %v629 = vpop.f32.mrb[0].mxu0
    %630 = vdwg.mxu0
    %v631 = vadd.f32 %v168, %v626
    %v632 = vtanh.pop %v631
    %v633 = vmul.f32 %v632, 0.5
    %v634 = vadd.f32 %v633, 0.5
    %v635 = vmul.f32 %v634, %v519
    %637 = vrot.lane.b32.xlu0 %v632, 64
    %v638 = vpop.permute.xlu0 %637
    %v640 = vmul.f32 %v634, %v638
    %642 = vrot.lane.b32.xlu0 %v640, 32
    %v643 = vpop.permute.xlu0 %642
    %v645 = vadd.f32 %v635, %v643
    %v646 = vtanh.pop %v645
    %648 = vrot.lane.b32.xlu0 %v646, 64
    %v649 = vpop.permute.xlu0 %648
    %v651 = vmul.f32 %v634, %v649
    %v652 = vpack.c.bf16 %v651, %v651
    %654 = vrot.lane.b32.xlu0 %v652, 32
    %v655 = vpop.permute.xlu0 %654
    %v657 = vsel %vm461, %v655, 0
    %659 = vmatprep.subr.bf16.mxu0 0
    %660 = vmatpush1.bf16.msra.mxu0 %v544
    %661 = vmatprep.subr.bf16.mxu0 0
    %662 = vmatpush1.bf16.msra.mxu0 %v545
    %663 = vmatprep.subr.bf16.mxu0 0
    %664 = vmatpush1.bf16.msra.mxu0 0
    %665 = vmatprep.subr.bf16.mxu0 0
    %666 = vmatpush1.bf16.msra.mxu0 0
    %667 = vmatprep.subr.bf16.mxu0 0
    %668 = vmatpush1.bf16.msra.mxu0 0
    %669 = vmatprep.subr.bf16.mxu0 0
    %670 = vmatpush1.bf16.msra.mxu0 0
    %671 = vmatprep.subr.bf16.mxu0 0
    %672 = vmatpush1.bf16.msra.mxu0 0
    %673 = vmatprep.subr.bf16.mxu0 0
    %674 = vmatpush1.bf16.msra.mxu0 0
    %675 = vmatprep.subr.bf16.mxu0 0
    %676 = vmatpush1.bf16.msra.mxu0 0
    %677 = vmatprep.subr.bf16.mxu0 0
    %678 = vmatpush1.bf16.msra.mxu0 0
    %679 = vmatprep.subr.bf16.mxu0 0
    %680 = vmatpush1.bf16.msra.mxu0 0
    %681 = vmatprep.subr.bf16.mxu0 0
    %682 = vmatpush1.bf16.msra.mxu0 0
    %683 = vmatprep.subr.bf16.mxu0 0
    %684 = vmatpush1.bf16.msra.mxu0 0
    %685 = vmatprep.subr.bf16.mxu0 0
    %686 = vmatpush1.bf16.msra.mxu0 0
    %687 = vmatprep.subr.bf16.mxu0 0
    %688 = vmatpush1.bf16.msra.mxu0 0
    %689 = vmatprep.subr.bf16.mxu0 0
    %690 = vmatpush1.bf16.msra.mxu0 0
    %691 = vmatprep.mubr.bf16.mxu0 0
    %692 = vmatmul.mubr.bf16.gmra.mrb[0].mxu0 %v657
    %v693 = vpop.f32.mrb[0].mxu0
    %v694 = vadd.f32 %v531, %v693
    %v695 = vpop.f32.mrb[0].mxu0
    %v696 = vpop.f32.mrb[0].mxu0
    %v697 = vpop.f32.mrb[0].mxu0
    %698 = vdwg.mxu0
    %v703 = vunpack.c.l.b16 %v65
    %v704 = vunpack.c.l.b16 %v66
    %v705 = vunpack.c.l.b16 %v67
    %v706 = vunpack.c.l.b16 %v68
    %v707 = vpack.c.b16 %v704, %v703
    %v708 = vpack.c.b16 %v706, %v705
    %711 = vmatprep.subr.bf16.mxu0 0
    %712 = vmatpush1.bf16.msra.mxu0 %v707
    %713 = vmatprep.subr.bf16.mxu0 0
    %714 = vmatpush1.bf16.msra.mxu0 %v708
    %715 = vmatprep.subr.bf16.mxu0 0
    %716 = vmatpush1.bf16.msra.mxu0 0
    %717 = vmatprep.subr.bf16.mxu0 0
    %718 = vmatpush1.bf16.msra.mxu0 0
    %719 = vmatprep.subr.bf16.mxu0 0
    %720 = vmatpush1.bf16.msra.mxu0 0
    %721 = vmatprep.subr.bf16.mxu0 0
    %722 = vmatpush1.bf16.msra.mxu0 0
    %723 = vmatprep.subr.bf16.mxu0 0
    %724 = vmatpush1.bf16.msra.mxu0 0
    %725 = vmatprep.subr.bf16.mxu0 0
    %726 = vmatpush1.bf16.msra.mxu0 0
    %727 = vmatprep.subr.bf16.mxu0 0
    %728 = vmatpush1.bf16.msra.mxu0 0
    %729 = vmatprep.subr.bf16.mxu0 0
    %730 = vmatpush1.bf16.msra.mxu0 0
    %731 = vmatprep.subr.bf16.mxu0 0
    %732 = vmatpush1.bf16.msra.mxu0 0
    %733 = vmatprep.subr.bf16.mxu0 0
    %734 = vmatpush1.bf16.msra.mxu0 0
    %735 = vmatprep.subr.bf16.mxu0 0
    %736 = vmatpush1.bf16.msra.mxu0 0
    %737 = vmatprep.subr.bf16.mxu0 0
    %738 = vmatpush1.bf16.msra.mxu0 0
    %739 = vmatprep.subr.bf16.mxu0 0
    %740 = vmatpush1.bf16.msra.mxu0 0
    %741 = vmatprep.subr.bf16.mxu0 0
    %742 = vmatpush1.bf16.msra.mxu0 0
    %743 = vmatprep.mubr.bf16.mxu0 0
    %744 = vmatmul.mubr.bf16.gmra.mrb[0].mxu0 %v463
    %v745 = vpop.f32.mrb[0].mxu0
    %v746 = vadd.f32 0.0, %v745
    %v747 = vpop.f32.mrb[0].mxu0
    %v748 = vpop.f32.mrb[0].mxu0
    %v749 = vpop.f32.mrb[0].mxu0
    %750 = vdwg.mxu0
    %v751 = vadd.f32 %v586, %v746
    %v752 = vtanh.pop %v751
    %v753 = vmul.f32 %v752, 0.5
    %v754 = vadd.f32 %v753, 0.5
    %v755 = vmul.f32 %v754, 0.0
    %757 = vrot.lane.b32.xlu0 %v752, 64
    %v758 = vpop.permute.xlu0 %757
    %v760 = vmul.f32 %v754, %v758
    %762 = vrot.lane.b32.xlu0 %v760, 32
    %v763 = vpop.permute.xlu0 %762
    %v765 = vadd.f32 %v755, %v763
    %v766 = vtanh.pop %v765
    %768 = vrot.lane.b32.xlu0 %v766, 64
    %v769 = vpop.permute.xlu0 %768
    %v771 = vmul.f32 %v754, %v769
    %v772 = vpack.c.bf16 %v771, %v771
    %773 = vmatprep.subr.bf16.mxu0 0
    %774 = vmatpush1.bf16.msra.mxu0 %v457
    %775 = vmatprep.subr.bf16.mxu0 0
    %776 = vmatpush1.bf16.msra.mxu0 %v458
    %777 = vmatprep.subr.bf16.mxu0 0
    %778 = vmatpush1.bf16.msra.mxu0 0
    %779 = vmatprep.subr.bf16.mxu0 0
    %780 = vmatpush1.bf16.msra.mxu0 0
    %781 = vmatprep.subr.bf16.mxu0 0
    %782 = vmatpush1.bf16.msra.mxu0 0
    %783 = vmatprep.subr.bf16.mxu0 0
    %784 = vmatpush1.bf16.msra.mxu0 0
    %785 = vmatprep.subr.bf16.mxu0 0
    %786 = vmatpush1.bf16.msra.mxu0 0
    %787 = vmatprep.subr.bf16.mxu0 0
    %788 = vmatpush1.bf16.msra.mxu0 0
    %789 = vmatprep.subr.bf16.mxu0 0
    %790 = vmatpush1.bf16.msra.mxu0 0
    %791 = vmatprep.subr.bf16.mxu0 0
    %792 = vmatpush1.bf16.msra.mxu0 0
    %793 = vmatprep.subr.bf16.mxu0 0
    %794 = vmatpush1.bf16.msra.mxu0 0
    %795 = vmatprep.subr.bf16.mxu0 0
    %796 = vmatpush1.bf16.msra.mxu0 0
    %797 = vmatprep.subr.bf16.mxu0 0
    %798 = vmatpush1.bf16.msra.mxu0 0
    %799 = vmatprep.subr.bf16.mxu0 0
    %800 = vmatpush1.bf16.msra.mxu0 0
    %801 = vmatprep.subr.bf16.mxu0 0
    %802 = vmatpush1.bf16.msra.mxu0 0
    %803 = vmatprep.subr.bf16.mxu0 0
    %804 = vmatpush1.bf16.msra.mxu0 0
    %805 = vmatprep.mubr.bf16.mxu0 0
    %806 = vmatmul.mubr.bf16.gmra.mrb[0].mxu0 %v657
    %v807 = vpop.f32.mrb[0].mxu0
    %v808 = vadd.f32 0.0, %v807
    %v809 = vpop.f32.mrb[0].mxu0
    %v810 = vpop.f32.mrb[0].mxu0
    %v811 = vpop.f32.mrb[0].mxu0
    %812 = vdwg.mxu0
    %v813 = vadd.f32 %v214, %v808
    %v814 = vtanh.pop %v813
    %v815 = vmul.f32 %v814, 0.5
    %v816 = vadd.f32 %v815, 0.5
    %v817 = vmul.f32 %v816, %v645
    %819 = vrot.lane.b32.xlu0 %v814, 64
    %v820 = vpop.permute.xlu0 %819
    %v822 = vmul.f32 %v816, %v820
    %824 = vrot.lane.b32.xlu0 %v822, 32
    %v825 = vpop.permute.xlu0 %824
    %v827 = vadd.f32 %v817, %v825
    %v828 = vtanh.pop %v827
    %830 = vrot.lane.b32.xlu0 %v828, 64
    %v831 = vpop.permute.xlu0 %830
    %v833 = vmul.f32 %v816, %v831
    %v834 = vpack.c.bf16 %v833, %v833
    %836 = vrot.lane.b32.xlu0 %v834, 32
    %v837 = vpop.permute.xlu0 %836
    %v839 = vsel %vm461, %v837, 0
    %841 = vmatprep.subr.bf16.mxu0 0
    %842 = vmatpush1.bf16.msra.mxu0 %v544
    %843 = vmatprep.subr.bf16.mxu0 0
    %844 = vmatpush1.bf16.msra.mxu0 %v545
    %845 = vmatprep.subr.bf16.mxu0 0
    %846 = vmatpush1.bf16.msra.mxu0 0
    %847 = vmatprep.subr.bf16.mxu0 0
    %848 = vmatpush1.bf16.msra.mxu0 0
    %849 = vmatprep.subr.bf16.mxu0 0
    %850 = vmatpush1.bf16.msra.mxu0 0
    %851 = vmatprep.subr.bf16.mxu0 0
    %852 = vmatpush1.bf16.msra.mxu0 0
    %853 = vmatprep.subr.bf16.mxu0 0
    %854 = vmatpush1.bf16.msra.mxu0 0
    %855 = vmatprep.subr.bf16.mxu0 0
    %856 = vmatpush1.bf16.msra.mxu0 0
    %857 = vmatprep.subr.bf16.mxu0 0
    %858 = vmatpush1.bf16.msra.mxu0 0
    %859 = vmatprep.subr.bf16.mxu0 0
    %860 = vmatpush1.bf16.msra.mxu0 0
    %861 = vmatprep.subr.bf16.mxu0 0
    %862 = vmatpush1.bf16.msra.mxu0 0
    %863 = vmatprep.subr.bf16.mxu0 0
    %864 = vmatpush1.bf16.msra.mxu0 0
    %865 = vmatprep.subr.bf16.mxu0 0
    %866 = vmatpush1.bf16.msra.mxu0 0
    %867 = vmatprep.subr.bf16.mxu0 0
    %868 = vmatpush1.bf16.msra.mxu0 0
    %869 = vmatprep.subr.bf16.mxu0 0
    %870 = vmatpush1.bf16.msra.mxu0 0
    %871 = vmatprep.subr.bf16.mxu0 0
    %872 = vmatpush1.bf16.msra.mxu0 0
    %873 = vmatprep.mubr.bf16.mxu0 0
    %874 = vmatmul.mubr.bf16.gmra.mrb[0].mxu0 %v839
    %v875 = vpop.f32.mrb[0].mxu0
    %v876 = vadd.f32 %v531, %v875
    %v877 = vpop.f32.mrb[0].mxu0
    %v878 = vpop.f32.mrb[0].mxu0
    %v879 = vpop.f32.mrb[0].mxu0
    %880 = vdwg.mxu0
    %882 = vrot.lane.b32.xlu0 %v772, 32
    %v883 = vpop.permute.xlu0 %882
    %v885 = vsel %vm461, %v883, 0
    %887 = vmatprep.subr.bf16.mxu0 0
    %888 = vmatpush1.bf16.msra.mxu0 %v707
    %889 = vmatprep.subr.bf16.mxu0 0
    %890 = vmatpush1.bf16.msra.mxu0 %v708
    %891 = vmatprep.subr.bf16.mxu0 0
    %892 = vmatpush1.bf16.msra.mxu0 0
    %893 = vmatprep.subr.bf16.mxu0 0
    %894 = vmatpush1.bf16.msra.mxu0 0
    %895 = vmatprep.subr.bf16.mxu0 0
    %896 = vmatpush1.bf16.msra.mxu0 0
    %897 = vmatprep.subr.bf16.mxu0 0
    %898 = vmatpush1.bf16.msra.mxu0 0
    %899 = vmatprep.subr.bf16.mxu0 0
    %900 = vmatpush1.bf16.msra.mxu0 0
    %901 = vmatprep.subr.bf16.mxu0 0
    %902 = vmatpush1.bf16.msra.mxu0 0
    %903 = vmatprep.subr.bf16.mxu0 0
    %904 = vmatpush1.bf16.msra.mxu0 0
    %905 = vmatprep.subr.bf16.mxu0 0
    %906 = vmatpush1.bf16.msra.mxu0 0
    %907 = vmatprep.subr.bf16.mxu0 0
    %908 = vmatpush1.bf16.msra.mxu0 0
    %909 = vmatprep.subr.bf16.mxu0 0
    %910 = vmatpush1.bf16.msra.mxu0 0
    %911 = vmatprep.subr.bf16.mxu0 0
    %912 = vmatpush1.bf16.msra.mxu0 0
    %913 = vmatprep.subr.bf16.mxu0 0
    %914 = vmatpush1.bf16.msra.mxu0 0
    %915 = vmatprep.subr.bf16.mxu0 0
    %916 = vmatpush1.bf16.msra.mxu0 0
    %917 = vmatprep.subr.bf16.mxu0 0
    %918 = vmatpush1.bf16.msra.mxu0 0
    %919 = vmatprep.mubr.bf16.mxu0 0
    %920 = vmatmul.mubr.bf16.gmra.mrb[0].mxu0 %v885
    %v921 = vpop.f32.mrb[0].mxu0
    %v922 = vadd.f32 0.0, %v921
    %v923 = vpop.f32.mrb[0].mxu0
    %v924 = vpop.f32.mrb[0].mxu0
    %v925 = vpop.f32.mrb[0].mxu0
    %926 = vdwg.mxu0
    %v927 = vadd.f32 %v694, %v922
    %v928 = vtanh.pop %v927
    %v929 = vmul.f32 %v928, 0.5
    %v930 = vadd.f32 %v929, 0.5
    %v931 = vmul.f32 %v930, %v765
    %933 = vrot.lane.b32.xlu0 %v928, 64
    %v934 = vpop.permute.xlu0 %933
    %v936 = vmul.f32 %v930, %v934
    %938 = vrot.lane.b32.xlu0 %v936, 32
    %v939 = vpop.permute.xlu0 %938
    %v941 = vadd.f32 %v931, %v939
    %v942 = vtanh.pop %v941
    %944 = vrot.lane.b32.xlu0 %v942, 64
    %v945 = vpop.permute.xlu0 %944
    %v947 = vmul.f32 %v930, %v945
    %v948 = vpack.c.bf16 %v947, %v947
    %949 = vmatprep.subr.bf16.mxu0 0
    %950 = vmatpush1.bf16.msra.mxu0 %v457
    %951 = vmatprep.subr.bf16.mxu0 0
    %952 = vmatpush1.bf16.msra.mxu0 %v458
    %953 = vmatprep.subr.bf16.mxu0 0
    %954 = vmatpush1.bf16.msra.mxu0 0
    %955 = vmatprep.subr.bf16.mxu0 0
    %956 = vmatpush1.bf16.msra.mxu0 0
    %957 = vmatprep.subr.bf16.mxu0 0
    %958 = vmatpush1.bf16.msra.mxu0 0
    %959 = vmatprep.subr.bf16.mxu0 0
    %960 = vmatpush1.bf16.msra.mxu0 0
    %961 = vmatprep.subr.bf16.mxu0 0
    %962 = vmatpush1.bf16.msra.mxu0 0
    %963 = vmatprep.subr.bf16.mxu0 0
    %964 = vmatpush1.bf16.msra.mxu0 0
    %965 = vmatprep.subr.bf16.mxu0 0
    %966 = vmatpush1.bf16.msra.mxu0 0
    %967 = vmatprep.subr.bf16.mxu0 0
    %968 = vmatpush1.bf16.msra.mxu0 0
    %969 = vmatprep.subr.bf16.mxu0 0
    %970 = vmatpush1.bf16.msra.mxu0 0
    %971 = vmatprep.subr.bf16.mxu0 0
    %972 = vmatpush1.bf16.msra.mxu0 0
    %973 = vmatprep.subr.bf16.mxu0 0
    %974 = vmatpush1.bf16.msra.mxu0 0
    %975 = vmatprep.subr.bf16.mxu0 0
    %976 = vmatpush1.bf16.msra.mxu0 0
    %977 = vmatprep.subr.bf16.mxu0 0
    %978 = vmatpush1.bf16.msra.mxu0 0
    %979 = vmatprep.subr.bf16.mxu0 0
    %980 = vmatpush1.bf16.msra.mxu0 0
    %981 = vmatprep.mubr.bf16.mxu0 0
    %982 = vmatmul.mubr.bf16.gmra.mrb[0].mxu0 %v839
    %v983 = vpop.f32.mrb[0].mxu0
    %v984 = vadd.f32 0.0, %v983
    %v985 = vpop.f32.mrb[0].mxu0
    %v986 = vpop.f32.mrb[0].mxu0
    %v987 = vpop.f32.mrb[0].mxu0
    %988 = vdwg.mxu0
    %v989 = vadd.f32 %v260, %v984
    %v990 = vtanh.pop %v989
    %v991 = vmul.f32 %v990, 0.5
    %v992 = vadd.f32 %v991, 0.5
    %v993 = vmul.f32 %v992, %v827
    %995 = vrot.lane.b32.xlu0 %v990, 64
    %v996 = vpop.permute.xlu0 %995
    %v998 = vmul.f32 %v992, %v996
    %1000 = vrot.lane.b32.xlu0 %v998, 32
    %v1001 = vpop.permute.xlu0 %1000
    %v1003 = vadd.f32 %v993, %v1001
    %v1004 = vtanh.pop %v1003
    %1006 = vrot.lane.b32.xlu0 %v1004, 64
    %v1007 = vpop.permute.xlu0 %1006
    %v1009 = vmul.f32 %v992, %v1007
    %v1010 = vpack.c.bf16 %v1009, %v1009
    %1012 = vrot.lane.b32.xlu0 %v1010, 32
    %v1013 = vpop.permute.xlu0 %1012
    %v1015 = vsel %vm461, %v1013, 0
    %1017 = vmatprep.subr.bf16.mxu0 0
    %1018 = vmatpush1.bf16.msra.mxu0 %v544
    %1019 = vmatprep.subr.bf16.mxu0 0
    %1020 = vmatpush1.bf16.msra.mxu0 %v545
    %1021 = vmatprep.subr.bf16.mxu0 0
    %1022 = vmatpush1.bf16.msra.mxu0 0
    %1023 = vmatprep.subr.bf16.mxu0 0
    %1024 = vmatpush1.bf16.msra.mxu0 0
    %1025 = vmatprep.subr.bf16.mxu0 0
    %1026 = vmatpush1.bf16.msra.mxu0 0
    %1027 = vmatprep.subr.bf16.mxu0 0
    %1028 = vmatpush1.bf16.msra.mxu0 0
    %1029 = vmatprep.subr.bf16.mxu0 0
    %1030 = vmatpush1.bf16.msra.mxu0 0
    %1031 = vmatprep.subr.bf16.mxu0 0
    %1032 = vmatpush1.bf16.msra.mxu0 0
    %1033 = vmatprep.subr.bf16.mxu0 0
    %1034 = vmatpush1.bf16.msra.mxu0 0
    %1035 = vmatprep.subr.bf16.mxu0 0
    %1036 = vmatpush1.bf16.msra.mxu0 0
    %1037 = vmatprep.subr.bf16.mxu0 0
    %1038 = vmatpush1.bf16.msra.mxu0 0
    %1039 = vmatprep.subr.bf16.mxu0 0
    %1040 = vmatpush1.bf16.msra.mxu0 0
    %1041 = vmatprep.subr.bf16.mxu0 0
    %1042 = vmatpush1.bf16.msra.mxu0 0
    %1043 = vmatprep.subr.bf16.mxu0 0
    %1044 = vmatpush1.bf16.msra.mxu0 0
    %1045 = vmatprep.subr.bf16.mxu0 0
    %1046 = vmatpush1.bf16.msra.mxu0 0
    %1047 = vmatprep.subr.bf16.mxu0 0
    %1048 = vmatpush1.bf16.msra.mxu0 0
    %1049 = vmatprep.mubr.bf16.mxu0 0
    %1050 = vmatmul.mubr.bf16.gmra.mrb[0].mxu0 %v1015
    %v1051 = vpop.f32.mrb[0].mxu0
    %v1052 = vadd.f32 %v531, %v1051
    %v1053 = vpop.f32.mrb[0].mxu0
    %v1054 = vpop.f32.mrb[0].mxu0
    %v1055 = vpop.f32.mrb[0].mxu0
    %1056 = vdwg.mxu0
    %1058 = vrot.lane.b32.xlu0 %v948, 32
    %v1059 = vpop.permute.xlu0 %1058
    %v1061 = vsel %vm461, %v1059, 0
    %1063 = vmatprep.subr.bf16.mxu0 0
    %1064 = vmatpush1.bf16.msra.mxu0 %v707
    %1065 = vmatprep.subr.bf16.mxu0 0
    %1066 = vmatpush1.bf16.msra.mxu0 %v708
    %1067 = vmatprep.subr.bf16.mxu0 0
    %1068 = vmatpush1.bf16.msra.mxu0 0
    %1069 = vmatprep.subr.bf16.mxu0 0
    %1070 = vmatpush1.bf16.msra.mxu0 0
    %1071 = vmatprep.subr.bf16.mxu0 0
    %1072 = vmatpush1.bf16.msra.mxu0 0
    %1073 = vmatprep.subr.bf16.mxu0 0
    %1074 = vmatpush1.bf16.msra.mxu0 0
    %1075 = vmatprep.subr.bf16.mxu0 0
    %1076 = vmatpush1.bf16.msra.mxu0 0
    %1077 = vmatprep.subr.bf16.mxu0 0
    %1078 = vmatpush1.bf16.msra.mxu0 0
    %1079 = vmatprep.subr.bf16.mxu0 0
    %1080 = vmatpush1.bf16.msra.mxu0 0
    %1081 = vmatprep.subr.bf16.mxu0 0
    %1082 = vmatpush1.bf16.msra.mxu0 0
    %1083 = vmatprep.subr.bf16.mxu0 0
    %1084 = vmatpush1.bf16.msra.mxu0 0
    %1085 = vmatprep.subr.bf16.mxu0 0
    %1086 = vmatpush1.bf16.msra.mxu0 0
    %1087 = vmatprep.subr.bf16.mxu0 0
    %1088 = vmatpush1.bf16.msra.mxu0 0
    %1089 = vmatprep.subr.bf16.mxu0 0
    %1090 = vmatpush1.bf16.msra.mxu0 0
    %1091 = vmatprep.subr.bf16.mxu0 0
    %1092 = vmatpush1.bf16.msra.mxu0 0
    %1093 = vmatprep.subr.bf16.mxu0 0
    %1094 = vmatpush1.bf16.msra.mxu0 0
    %1095 = vmatprep.mubr.bf16.mxu0 0
    %1096 = vmatmul.mubr.bf16.gmra.mrb[0].mxu0 %v1061
    %v1097 = vpop.f32.mrb[0].mxu0
    %v1098 = vadd.f32 0.0, %v1097
    %v1099 = vpop.f32.mrb[0].mxu0
    %v1100 = vpop.f32.mrb[0].mxu0
    %v1101 = vpop.f32.mrb[0].mxu0
    %1102 = vdwg.mxu0
    %v1103 = vadd.f32 %v876, %v1098
    %v1104 = vtanh.pop %v1103
    %v1105 = vmul.f32 %v1104, 0.5
    %v1106 = vadd.f32 %v1105, 0.5
    %v1107 = vmul.f32 %v1106, %v941
    %1109 = vrot.lane.b32.xlu0 %v1104, 64
    %v1110 = vpop.permute.xlu0 %1109
    %v1112 = vmul.f32 %v1106, %v1110
    %1114 = vrot.lane.b32.xlu0 %v1112, 32
    %v1115 = vpop.permute.xlu0 %1114
    %v1117 = vadd.f32 %v1107, %v1115
    %v1118 = vtanh.pop %v1117
    %1120 = vrot.lane.b32.xlu0 %v1118, 64
    %v1121 = vpop.permute.xlu0 %1120
    %v1123 = vmul.f32 %v1106, %v1121
    %v1124 = vpack.c.bf16 %v1123, %v1123
    %1125 = vmatprep.subr.bf16.mxu0 0
    %1126 = vmatpush1.bf16.msra.mxu0 %v457
    %1127 = vmatprep.subr.bf16.mxu0 0
    %1128 = vmatpush1.bf16.msra.mxu0 %v458
    %1129 = vmatprep.subr.bf16.mxu0 0
    %1130 = vmatpush1.bf16.msra.mxu0 0
    %1131 = vmatprep.subr.bf16.mxu0 0
    %1132 = vmatpush1.bf16.msra.mxu0 0
    %1133 = vmatprep.subr.bf16.mxu0 0
    %1134 = vmatpush1.bf16.msra.mxu0 0
    %1135 = vmatprep.subr.bf16.mxu0 0
    %1136 = vmatpush1.bf16.msra.mxu0 0
    %1137 = vmatprep.subr.bf16.mxu0 0
    %1138 = vmatpush1.bf16.msra.mxu0 0
    %1139 = vmatprep.subr.bf16.mxu0 0
    %1140 = vmatpush1.bf16.msra.mxu0 0
    %1141 = vmatprep.subr.bf16.mxu0 0
    %1142 = vmatpush1.bf16.msra.mxu0 0
    %1143 = vmatprep.subr.bf16.mxu0 0
    %1144 = vmatpush1.bf16.msra.mxu0 0
    %1145 = vmatprep.subr.bf16.mxu0 0
    %1146 = vmatpush1.bf16.msra.mxu0 0
    %1147 = vmatprep.subr.bf16.mxu0 0
    %1148 = vmatpush1.bf16.msra.mxu0 0
    %1149 = vmatprep.subr.bf16.mxu0 0
    %1150 = vmatpush1.bf16.msra.mxu0 0
    %1151 = vmatprep.subr.bf16.mxu0 0
    %1152 = vmatpush1.bf16.msra.mxu0 0
    %1153 = vmatprep.subr.bf16.mxu0 0
    %1154 = vmatpush1.bf16.msra.mxu0 0
    %1155 = vmatprep.subr.bf16.mxu0 0
    %1156 = vmatpush1.bf16.msra.mxu0 0
    %1157 = vmatprep.mubr.bf16.mxu0 0
    %1158 = vmatmul.mubr.bf16.gmra.mrb[0].mxu0 %v1015
    %v1159 = vpop.f32.mrb[0].mxu0
    %v1160 = vadd.f32 0.0, %v1159
    %v1161 = vpop.f32.mrb[0].mxu0
    %v1162 = vpop.f32.mrb[0].mxu0
    %v1163 = vpop.f32.mrb[0].mxu0
    %1164 = vdwg.mxu0
    %v1165 = vadd.f32 %v306, %v1160
    %v1166 = vtanh.pop %v1165
    %v1167 = vmul.f32 %v1166, 0.5
    %v1168 = vadd.f32 %v1167, 0.5
    %v1169 = vmul.f32 %v1168, %v1003
    %1171 = vrot.lane.b32.xlu0 %v1166, 64
    %v1172 = vpop.permute.xlu0 %1171
    %v1174 = vmul.f32 %v1168, %v1172
    %1176 = vrot.lane.b32.xlu0 %v1174, 32
    %v1177 = vpop.permute.xlu0 %1176
    %v1179 = vadd.f32 %v1169, %v1177
    %v1180 = vtanh.pop %v1179
    %1182 = vrot.lane.b32.xlu0 %v1180, 64
    %v1183 = vpop.permute.xlu0 %1182
    %v1185 = vmul.f32 %v1168, %v1183
    %v1186 = vpack.c.bf16 %v1185, %v1185
    %1188 = vrot.lane.b32.xlu0 %v1186, 32
    %v1189 = vpop.permute.xlu0 %1188
    %v1191 = vsel %vm461, %v1189, 0
    %1193 = vmatprep.subr.bf16.mxu0 0
    %1194 = vmatpush1.bf16.msra.mxu0 %v544
    %1195 = vmatprep.subr.bf16.mxu0 0
    %1196 = vmatpush1.bf16.msra.mxu0 %v545
    %1197 = vmatprep.subr.bf16.mxu0 0
    %1198 = vmatpush1.bf16.msra.mxu0 0
    %1199 = vmatprep.subr.bf16.mxu0 0
    %1200 = vmatpush1.bf16.msra.mxu0 0
    %1201 = vmatprep.subr.bf16.mxu0 0
    %1202 = vmatpush1.bf16.msra.mxu0 0
    %1203 = vmatprep.subr.bf16.mxu0 0
    %1204 = vmatpush1.bf16.msra.mxu0 0
    %1205 = vmatprep.subr.bf16.mxu0 0
    %1206 = vmatpush1.bf16.msra.mxu0 0
    %1207 = vmatprep.subr.bf16.mxu0 0
    %1208 = vmatpush1.bf16.msra.mxu0 0
    %1209 = vmatprep.subr.bf16.mxu0 0
    %1210 = vmatpush1.bf16.msra.mxu0 0
    %1211 = vmatprep.subr.bf16.mxu0 0
    %1212 = vmatpush1.bf16.msra.mxu0 0
    %1213 = vmatprep.subr.bf16.mxu0 0
    %1214 = vmatpush1.bf16.msra.mxu0 0
    %1215 = vmatprep.subr.bf16.mxu0 0
    %1216 = vmatpush1.bf16.msra.mxu0 0
    %1217 = vmatprep.subr.bf16.mxu0 0
    %1218 = vmatpush1.bf16.msra.mxu0 0
    %1219 = vmatprep.subr.bf16.mxu0 0
    %1220 = vmatpush1.bf16.msra.mxu0 0
    %1221 = vmatprep.subr.bf16.mxu0 0
    %1222 = vmatpush1.bf16.msra.mxu0 0
    %1223 = vmatprep.subr.bf16.mxu0 0
    %1224 = vmatpush1.bf16.msra.mxu0 0
    %1225 = vmatprep.mubr.bf16.mxu0 0
    %1226 = vmatmul.mubr.bf16.gmra.mrb[0].mxu0 %v1191
    %v1227 = vpop.f32.mrb[0].mxu0
    %v1228 = vadd.f32 %v531, %v1227
    %v1229 = vpop.f32.mrb[0].mxu0
    %v1230 = vpop.f32.mrb[0].mxu0
    %v1231 = vpop.f32.mrb[0].mxu0
    %1232 = vdwg.mxu0
    %1234 = vrot.lane.b32.xlu0 %v1124, 32
    %v1235 = vpop.permute.xlu0 %1234
    %v1237 = vsel %vm461, %v1235, 0
    %1239 = vmatprep.subr.bf16.mxu0 0
    %1240 = vmatpush1.bf16.msra.mxu0 %v707
    %1241 = vmatprep.subr.bf16.mxu0 0
    %1242 = vmatpush1.bf16.msra.mxu0 %v708
    %1243 = vmatprep.subr.bf16.mxu0 0
    %1244 = vmatpush1.bf16.msra.mxu0 0
    %1245 = vmatprep.subr.bf16.mxu0 0
    %1246 = vmatpush1.bf16.msra.mxu0 0
    %1247 = vmatprep.subr.bf16.mxu0 0
    %1248 = vmatpush1.bf16.msra.mxu0 0
    %1249 = vmatprep.subr.bf16.mxu0 0
    %1250 = vmatpush1.bf16.msra.mxu0 0
    %1251 = vmatprep.subr.bf16.mxu0 0
    %1252 = vmatpush1.bf16.msra.mxu0 0
    %1253 = vmatprep.subr.bf16.mxu0 0
    %1254 = vmatpush1.bf16.msra.mxu0 0
    %1255 = vmatprep.subr.bf16.mxu0 0
    %1256 = vmatpush1.bf16.msra.mxu0 0
    %1257 = vmatprep.subr.bf16.mxu0 0
    %1258 = vmatpush1.bf16.msra.mxu0 0
    %1259 = vmatprep.subr.bf16.mxu0 0
    %1260 = vmatpush1.bf16.msra.mxu0 0
    %1261 = vmatprep.subr.bf16.mxu0 0
    %1262 = vmatpush1.bf16.msra.mxu0 0
    %1263 = vmatprep.subr.bf16.mxu0 0
    %1264 = vmatpush1.bf16.msra.mxu0 0
    %1265 = vmatprep.subr.bf16.mxu0 0
    %1266 = vmatpush1.bf16.msra.mxu0 0
    %1267 = vmatprep.subr.bf16.mxu0 0
    %1268 = vmatpush1.bf16.msra.mxu0 0
    %1269 = vmatprep.subr.bf16.mxu0 0
    %1270 = vmatpush1.bf16.msra.mxu0 0
    %1271 = vmatprep.mubr.bf16.mxu0 0
    %1272 = vmatmul.mubr.bf16.gmra.mrb[0].mxu0 %v1237
    %v1273 = vpop.f32.mrb[0].mxu0
    %v1274 = vadd.f32 0.0, %v1273
    %v1275 = vpop.f32.mrb[0].mxu0
    %v1276 = vpop.f32.mrb[0].mxu0
    %v1277 = vpop.f32.mrb[0].mxu0
    %1278 = vdwg.mxu0
    %v1279 = vadd.f32 %v1052, %v1274
    %v1280 = vtanh.pop %v1279
    %v1281 = vmul.f32 %v1280, 0.5
    %v1282 = vadd.f32 %v1281, 0.5
    %v1283 = vmul.f32 %v1282, %v1117
    %1285 = vrot.lane.b32.xlu0 %v1280, 64
    %v1286 = vpop.permute.xlu0 %1285
    %v1288 = vmul.f32 %v1282, %v1286
    %1290 = vrot.lane.b32.xlu0 %v1288, 32
    %v1291 = vpop.permute.xlu0 %1290
    %v1293 = vadd.f32 %v1283, %v1291
    %v1294 = vtanh.pop %v1293
    %1296 = vrot.lane.b32.xlu0 %v1294, 64
    %v1297 = vpop.permute.xlu0 %1296
    %v1299 = vmul.f32 %v1282, %v1297
    %v1300 = vpack.c.bf16 %v1299, %v1299
    %1301 = vmatprep.subr.bf16.mxu0 0
    %1302 = vmatpush1.bf16.msra.mxu0 %v457
    %1303 = vmatprep.subr.bf16.mxu0 0
    %1304 = vmatpush1.bf16.msra.mxu0 %v458
    %1305 = vmatprep.subr.bf16.mxu0 0
    %1306 = vmatpush1.bf16.msra.mxu0 0
    %1307 = vmatprep.subr.bf16.mxu0 0
    %1308 = vmatpush1.bf16.msra.mxu0 0
    %1309 = vmatprep.subr.bf16.mxu0 0
    %1310 = vmatpush1.bf16.msra.mxu0 0
    %1311 = vmatprep.subr.bf16.mxu0 0
    %1312 = vmatpush1.bf16.msra.mxu0 0
    %1313 = vmatprep.subr.bf16.mxu0 0
    %1314 = vmatpush1.bf16.msra.mxu0 0
    %1315 = vmatprep.subr.bf16.mxu0 0
    %1316 = vmatpush1.bf16.msra.mxu0 0
    %1317 = vmatprep.subr.bf16.mxu0 0
    %1318 = vmatpush1.bf16.msra.mxu0 0
    %1319 = vmatprep.subr.bf16.mxu0 0
    %1320 = vmatpush1.bf16.msra.mxu0 0
    %1321 = vmatprep.subr.bf16.mxu0 0
    %1322 = vmatpush1.bf16.msra.mxu0 0
    %1323 = vmatprep.subr.bf16.mxu0 0
    %1324 = vmatpush1.bf16.msra.mxu0 0
    %1325 = vmatprep.subr.bf16.mxu0 0
    %1326 = vmatpush1.bf16.msra.mxu0 0
    %1327 = vmatprep.subr.bf16.mxu0 0
    %1328 = vmatpush1.bf16.msra.mxu0 0
    %1329 = vmatprep.subr.bf16.mxu0 0
    %1330 = vmatpush1.bf16.msra.mxu0 0
    %1331 = vmatprep.subr.bf16.mxu0 0
    %1332 = vmatpush1.bf16.msra.mxu0 0
    %1333 = vmatprep.mubr.bf16.mxu0 0
    %1334 = vmatmul.mubr.bf16.gmra.mrb[0].mxu0 %v1191
    %v1335 = vpop.f32.mrb[0].mxu0
    %v1336 = vadd.f32 0.0, %v1335
    %v1337 = vpop.f32.mrb[0].mxu0
    %v1338 = vpop.f32.mrb[0].mxu0
    %v1339 = vpop.f32.mrb[0].mxu0
    %1340 = vdwg.mxu0
    %v1341 = vadd.f32 %v352, %v1336
    %v1342 = vtanh.pop %v1341
    %v1343 = vmul.f32 %v1342, 0.5
    %v1344 = vadd.f32 %v1343, 0.5
    %v1345 = vmul.f32 %v1344, %v1179
    %1347 = vrot.lane.b32.xlu0 %v1342, 64
    %v1348 = vpop.permute.xlu0 %1347
    %v1350 = vmul.f32 %v1344, %v1348
    %1352 = vrot.lane.b32.xlu0 %v1350, 32
    %v1353 = vpop.permute.xlu0 %1352
    %v1355 = vadd.f32 %v1345, %v1353
    %v1356 = vtanh.pop %v1355
    %1358 = vrot.lane.b32.xlu0 %v1356, 64
    %v1359 = vpop.permute.xlu0 %1358
    %v1361 = vmul.f32 %v1344, %v1359
    %v1362 = vpack.c.bf16 %v1361, %v1361
    %1364 = vrot.lane.b32.xlu0 %v1362, 32
    %v1365 = vpop.permute.xlu0 %1364
    %v1367 = vsel %vm461, %v1365, 0
    %1369 = vmatprep.subr.bf16.mxu0 0
    %1370 = vmatpush1.bf16.msra.mxu0 %v544
    %1371 = vmatprep.subr.bf16.mxu0 0
    %1372 = vmatpush1.bf16.msra.mxu0 %v545
    %1373 = vmatprep.subr.bf16.mxu0 0
    %1374 = vmatpush1.bf16.msra.mxu0 0
    %1375 = vmatprep.subr.bf16.mxu0 0
    %1376 = vmatpush1.bf16.msra.mxu0 0
    %1377 = vmatprep.subr.bf16.mxu0 0
    %1378 = vmatpush1.bf16.msra.mxu0 0
    %1379 = vmatprep.subr.bf16.mxu0 0
    %1380 = vmatpush1.bf16.msra.mxu0 0
    %1381 = vmatprep.subr.bf16.mxu0 0
    %1382 = vmatpush1.bf16.msra.mxu0 0
    %1383 = vmatprep.subr.bf16.mxu0 0
    %1384 = vmatpush1.bf16.msra.mxu0 0
    %1385 = vmatprep.subr.bf16.mxu0 0
    %1386 = vmatpush1.bf16.msra.mxu0 0
    %1387 = vmatprep.subr.bf16.mxu0 0
    %1388 = vmatpush1.bf16.msra.mxu0 0
    %1389 = vmatprep.subr.bf16.mxu0 0
    %1390 = vmatpush1.bf16.msra.mxu0 0
    %1391 = vmatprep.subr.bf16.mxu0 0
    %1392 = vmatpush1.bf16.msra.mxu0 0
    %1393 = vmatprep.subr.bf16.mxu0 0
    %1394 = vmatpush1.bf16.msra.mxu0 0
    %1395 = vmatprep.subr.bf16.mxu0 0
    %1396 = vmatpush1.bf16.msra.mxu0 0
    %1397 = vmatprep.subr.bf16.mxu0 0
    %1398 = vmatpush1.bf16.msra.mxu0 0
    %1399 = vmatprep.subr.bf16.mxu0 0
    %1400 = vmatpush1.bf16.msra.mxu0 0
    %1401 = vmatprep.mubr.bf16.mxu0 0
    %1402 = vmatmul.mubr.bf16.gmra.mrb[0].mxu0 %v1367
    %v1403 = vpop.f32.mrb[0].mxu0
    %v1404 = vadd.f32 %v531, %v1403
    %v1405 = vpop.f32.mrb[0].mxu0
    %v1406 = vpop.f32.mrb[0].mxu0
    %v1407 = vpop.f32.mrb[0].mxu0
    %1408 = vdwg.mxu0
    %1410 = vrot.lane.b32.xlu0 %v1300, 32
    %v1411 = vpop.permute.xlu0 %1410
    %v1413 = vsel %vm461, %v1411, 0
    %1415 = vmatprep.subr.bf16.mxu0 0
    %1416 = vmatpush1.bf16.msra.mxu0 %v707
    %1417 = vmatprep.subr.bf16.mxu0 0
    %1418 = vmatpush1.bf16.msra.mxu0 %v708
    %1419 = vmatprep.subr.bf16.mxu0 0
    %1420 = vmatpush1.bf16.msra.mxu0 0
    %1421 = vmatprep.subr.bf16.mxu0 0
    %1422 = vmatpush1.bf16.msra.mxu0 0
    %1423 = vmatprep.subr.bf16.mxu0 0
    %1424 = vmatpush1.bf16.msra.mxu0 0
    %1425 = vmatprep.subr.bf16.mxu0 0
    %1426 = vmatpush1.bf16.msra.mxu0 0
    %1427 = vmatprep.subr.bf16.mxu0 0
    %1428 = vmatpush1.bf16.msra.mxu0 0
    %1429 = vmatprep.subr.bf16.mxu0 0
    %1430 = vmatpush1.bf16.msra.mxu0 0
    %1431 = vmatprep.subr.bf16.mxu0 0
    %1432 = vmatpush1.bf16.msra.mxu0 0
    %1433 = vmatprep.subr.bf16.mxu0 0
    %1434 = vmatpush1.bf16.msra.mxu0 0
    %1435 = vmatprep.subr.bf16.mxu0 0
    %1436 = vmatpush1.bf16.msra.mxu0 0
    %1437 = vmatprep.subr.bf16.mxu0 0
    %1438 = vmatpush1.bf16.msra.mxu0 0
    %1439 = vmatprep.subr.bf16.mxu0 0
    %1440 = vmatpush1.bf16.msra.mxu0 0
    %1441 = vmatprep.subr.bf16.mxu0 0
    %1442 = vmatpush1.bf16.msra.mxu0 0
    %1443 = vmatprep.subr.bf16.mxu0 0
    %1444 = vmatpush1.bf16.msra.mxu0 0
    %1445 = vmatprep.subr.bf16.mxu0 0
    %1446 = vmatpush1.bf16.msra.mxu0 0
    %1447 = vmatprep.mubr.bf16.mxu0 0
    %1448 = vmatmul.mubr.bf16.gmra.mrb[0].mxu0 %v1413
    %v1449 = vpop.f32.mrb[0].mxu0
    %v1450 = vadd.f32 0.0, %v1449
    %v1451 = vpop.f32.mrb[0].mxu0
    %v1452 = vpop.f32.mrb[0].mxu0
    %v1453 = vpop.f32.mrb[0].mxu0
    %1454 = vdwg.mxu0
    %v1455 = vadd.f32 %v1228, %v1450
    %v1456 = vtanh.pop %v1455
    %v1457 = vmul.f32 %v1456, 0.5
    %v1458 = vadd.f32 %v1457, 0.5
    %v1459 = vmul.f32 %v1458, %v1293
    %1461 = vrot.lane.b32.xlu0 %v1456, 64
    %v1462 = vpop.permute.xlu0 %1461
    %v1464 = vmul.f32 %v1458, %v1462
    %1466 = vrot.lane.b32.xlu0 %v1464, 32
    %v1467 = vpop.permute.xlu0 %1466
    %v1469 = vadd.f32 %v1459, %v1467
    %v1470 = vtanh.pop %v1469
    %1472 = vrot.lane.b32.xlu0 %v1470, 64
    %v1473 = vpop.permute.xlu0 %1472
    %v1475 = vmul.f32 %v1458, %v1473
    %v1476 = vpack.c.bf16 %v1475, %v1475
    %1477 = vmatprep.subr.bf16.mxu0 0
    %1478 = vmatpush1.bf16.msra.mxu0 %v457
    %1479 = vmatprep.subr.bf16.mxu0 0
    %1480 = vmatpush1.bf16.msra.mxu0 %v458
    %1481 = vmatprep.subr.bf16.mxu0 0
    %1482 = vmatpush1.bf16.msra.mxu0 0
    %1483 = vmatprep.subr.bf16.mxu0 0
    %1484 = vmatpush1.bf16.msra.mxu0 0
    %1485 = vmatprep.subr.bf16.mxu0 0
    %1486 = vmatpush1.bf16.msra.mxu0 0
    %1487 = vmatprep.subr.bf16.mxu0 0
    %1488 = vmatpush1.bf16.msra.mxu0 0
    %1489 = vmatprep.subr.bf16.mxu0 0
    %1490 = vmatpush1.bf16.msra.mxu0 0
    %1491 = vmatprep.subr.bf16.mxu0 0
    %1492 = vmatpush1.bf16.msra.mxu0 0
    %1493 = vmatprep.subr.bf16.mxu0 0
    %1494 = vmatpush1.bf16.msra.mxu0 0
    %1495 = vmatprep.subr.bf16.mxu0 0
    %1496 = vmatpush1.bf16.msra.mxu0 0
    %1497 = vmatprep.subr.bf16.mxu0 0
    %1498 = vmatpush1.bf16.msra.mxu0 0
    %1499 = vmatprep.subr.bf16.mxu0 0
    %1500 = vmatpush1.bf16.msra.mxu0 0
    %1501 = vmatprep.subr.bf16.mxu0 0
    %1502 = vmatpush1.bf16.msra.mxu0 0
    %1503 = vmatprep.subr.bf16.mxu0 0
    %1504 = vmatpush1.bf16.msra.mxu0 0
    %1505 = vmatprep.subr.bf16.mxu0 0
    %1506 = vmatpush1.bf16.msra.mxu0 0
    %1507 = vmatprep.subr.bf16.mxu0 0
    %1508 = vmatpush1.bf16.msra.mxu0 0
    %1509 = vmatprep.mubr.bf16.mxu0 0
    %1510 = vmatmul.mubr.bf16.gmra.mrb[0].mxu0 %v1367
    %v1511 = vpop.f32.mrb[0].mxu0
    %v1512 = vadd.f32 0.0, %v1511
    %v1513 = vpop.f32.mrb[0].mxu0
    %v1514 = vpop.f32.mrb[0].mxu0
    %v1515 = vpop.f32.mrb[0].mxu0
    %1516 = vdwg.mxu0
    %v1517 = vadd.f32 %v398, %v1512
    %v1518 = vtanh.pop %v1517
    %v1519 = vmul.f32 %v1518, 0.5
    %v1520 = vadd.f32 %v1519, 0.5
    %v1521 = vmul.f32 %v1520, %v1355
    %1523 = vrot.lane.b32.xlu0 %v1518, 64
    %v1524 = vpop.permute.xlu0 %1523
    %v1526 = vmul.f32 %v1520, %v1524
    %1528 = vrot.lane.b32.xlu0 %v1526, 32
    %v1529 = vpop.permute.xlu0 %1528
    %v1531 = vadd.f32 %v1521, %v1529
    %v1532 = vtanh.pop %v1531
    %1534 = vrot.lane.b32.xlu0 %v1532, 64
    %v1535 = vpop.permute.xlu0 %1534
    %v1537 = vmul.f32 %v1520, %v1535
    %v1538 = vpack.c.bf16 %v1537, %v1537
    %1540 = vrot.lane.b32.xlu0 %v1538, 32
    %v1541 = vpop.permute.xlu0 %1540
    %v1543 = vsel %vm461, %v1541, 0
    %1545 = vmatprep.subr.bf16.mxu0 0
    %1546 = vmatpush1.bf16.msra.mxu0 %v544
    %1547 = vmatprep.subr.bf16.mxu0 0
    %1548 = vmatpush1.bf16.msra.mxu0 %v545
    %1549 = vmatprep.subr.bf16.mxu0 0
    %1550 = vmatpush1.bf16.msra.mxu0 0
    %1551 = vmatprep.subr.bf16.mxu0 0
    %1552 = vmatpush1.bf16.msra.mxu0 0
    %1553 = vmatprep.subr.bf16.mxu0 0
    %1554 = vmatpush1.bf16.msra.mxu0 0
    %1555 = vmatprep.subr.bf16.mxu0 0
    %1556 = vmatpush1.bf16.msra.mxu0 0
    %1557 = vmatprep.subr.bf16.mxu0 0
    %1558 = vmatpush1.bf16.msra.mxu0 0
    %1559 = vmatprep.subr.bf16.mxu0 0
    %1560 = vmatpush1.bf16.msra.mxu0 0
    %1561 = vmatprep.subr.bf16.mxu0 0
    %1562 = vmatpush1.bf16.msra.mxu0 0
    %1563 = vmatprep.subr.bf16.mxu0 0
    %1564 = vmatpush1.bf16.msra.mxu0 0
    %1565 = vmatprep.subr.bf16.mxu0 0
    %1566 = vmatpush1.bf16.msra.mxu0 0
    %1567 = vmatprep.subr.bf16.mxu0 0
    %1568 = vmatpush1.bf16.msra.mxu0 0
    %1569 = vmatprep.subr.bf16.mxu0 0
    %1570 = vmatpush1.bf16.msra.mxu0 0
    %1571 = vmatprep.subr.bf16.mxu0 0
    %1572 = vmatpush1.bf16.msra.mxu0 0
    %1573 = vmatprep.subr.bf16.mxu0 0
    %1574 = vmatpush1.bf16.msra.mxu0 0
    %1575 = vmatprep.subr.bf16.mxu0 0
    %1576 = vmatpush1.bf16.msra.mxu0 0
    %1577 = vmatprep.mubr.bf16.mxu0 0
    %1578 = vmatmul.mubr.bf16.gmra.mrb[0].mxu0 %v1543
    %v1579 = vpop.f32.mrb[0].mxu0
    %v1580 = vadd.f32 %v531, %v1579
    %v1581 = vpop.f32.mrb[0].mxu0
    %v1582 = vpop.f32.mrb[0].mxu0
    %v1583 = vpop.f32.mrb[0].mxu0
    %1584 = vdwg.mxu0
    %1586 = vrot.lane.b32.xlu0 %v1476, 32
    %v1587 = vpop.permute.xlu0 %1586
    %v1589 = vsel %vm461, %v1587, 0
    %1591 = vmatprep.subr.bf16.mxu0 0
    %1592 = vmatpush1.bf16.msra.mxu0 %v707
    %1593 = vmatprep.subr.bf16.mxu0 0
    %1594 = vmatpush1.bf16.msra.mxu0 %v708
    %1595 = vmatprep.subr.bf16.mxu0 0
    %1596 = vmatpush1.bf16.msra.mxu0 0
    %1597 = vmatprep.subr.bf16.mxu0 0
    %1598 = vmatpush1.bf16.msra.mxu0 0
    %1599 = vmatprep.subr.bf16.mxu0 0
    %1600 = vmatpush1.bf16.msra.mxu0 0
    %1601 = vmatprep.subr.bf16.mxu0 0
    %1602 = vmatpush1.bf16.msra.mxu0 0
    %1603 = vmatprep.subr.bf16.mxu0 0
    %1604 = vmatpush1.bf16.msra.mxu0 0
    %1605 = vmatprep.subr.bf16.mxu0 0
    %1606 = vmatpush1.bf16.msra.mxu0 0
    %1607 = vmatprep.subr.bf16.mxu0 0
    %1608 = vmatpush1.bf16.msra.mxu0 0
    %1609 = vmatprep.subr.bf16.mxu0 0
    %1610 = vmatpush1.bf16.msra.mxu0 0
    %1611 = vmatprep.subr.bf16.mxu0 0
    %1612 = vmatpush1.bf16.msra.mxu0 0
    %1613 = vmatprep.subr.bf16.mxu0 0
    %1614 = vmatpush1.bf16.msra.mxu0 0
    %1615 = vmatprep.subr.bf16.mxu0 0
    %1616 = vmatpush1.bf16.msra.mxu0 0
    %1617 = vmatprep.subr.bf16.mxu0 0
    %1618 = vmatpush1.bf16.msra.mxu0 0
    %1619 = vmatprep.subr.bf16.mxu0 0
    %1620 = vmatpush1.bf16.msra.mxu0 0
    %1621 = vmatprep.subr.bf16.mxu0 0
    %1622 = vmatpush1.bf16.msra.mxu0 0
    %1623 = vmatprep.mubr.bf16.mxu0 0
    %1624 = vmatmul.mubr.bf16.gmra.mrb[0].mxu0 %v1589
    %v1625 = vpop.f32.mrb[0].mxu0
    %v1626 = vadd.f32 0.0, %v1625
    %v1627 = vpop.f32.mrb[0].mxu0
    %v1628 = vpop.f32.mrb[0].mxu0
    %v1629 = vpop.f32.mrb[0].mxu0
    %1630 = vdwg.mxu0
    %v1631 = vadd.f32 %v1404, %v1626
    %v1632 = vtanh.pop %v1631
    %v1633 = vmul.f32 %v1632, 0.5
    %v1634 = vadd.f32 %v1633, 0.5
    %v1635 = vmul.f32 %v1634, %v1469
    %1637 = vrot.lane.b32.xlu0 %v1632, 64
    %v1638 = vpop.permute.xlu0 %1637
    %v1640 = vmul.f32 %v1634, %v1638
    %1642 = vrot.lane.b32.xlu0 %v1640, 32
    %v1643 = vpop.permute.xlu0 %1642
    %v1645 = vadd.f32 %v1635, %v1643
    %v1646 = vtanh.pop %v1645
    %1648 = vrot.lane.b32.xlu0 %v1646, 64
    %v1649 = vpop.permute.xlu0 %1648
    %v1651 = vmul.f32 %v1634, %v1649
    %v1652 = vpack.c.bf16 %v1651, %v1651
    %1653 = vmatprep.subr.bf16.mxu0 0
    %1654 = vmatpush1.bf16.msra.mxu0 %v457
    %1655 = vmatprep.subr.bf16.mxu0 0
    %1656 = vmatpush1.bf16.msra.mxu0 %v458
    %1657 = vmatprep.subr.bf16.mxu0 0
    %1658 = vmatpush1.bf16.msra.mxu0 0
    %1659 = vmatprep.subr.bf16.mxu0 0
    %1660 = vmatpush1.bf16.msra.mxu0 0
    %1661 = vmatprep.subr.bf16.mxu0 0
    %1662 = vmatpush1.bf16.msra.mxu0 0
    %1663 = vmatprep.subr.bf16.mxu0 0
    %1664 = vmatpush1.bf16.msra.mxu0 0
    %1665 = vmatprep.subr.bf16.mxu0 0
    %1666 = vmatpush1.bf16.msra.mxu0 0
    %1667 = vmatprep.subr.bf16.mxu0 0
    %1668 = vmatpush1.bf16.msra.mxu0 0
    %1669 = vmatprep.subr.bf16.mxu0 0
    %1670 = vmatpush1.bf16.msra.mxu0 0
    %1671 = vmatprep.subr.bf16.mxu0 0
    %1672 = vmatpush1.bf16.msra.mxu0 0
    %1673 = vmatprep.subr.bf16.mxu0 0
    %1674 = vmatpush1.bf16.msra.mxu0 0
    %1675 = vmatprep.subr.bf16.mxu0 0
    %1676 = vmatpush1.bf16.msra.mxu0 0
    %1677 = vmatprep.subr.bf16.mxu0 0
    %1678 = vmatpush1.bf16.msra.mxu0 0
    %1679 = vmatprep.subr.bf16.mxu0 0
    %1680 = vmatpush1.bf16.msra.mxu0 0
    %1681 = vmatprep.subr.bf16.mxu0 0
    %1682 = vmatpush1.bf16.msra.mxu0 0
    %1683 = vmatprep.subr.bf16.mxu0 0
    %1684 = vmatpush1.bf16.msra.mxu0 0
    %1685 = vmatprep.mubr.bf16.mxu0 0
    %1686 = vmatmul.mubr.bf16.gmra.mrb[0].mxu0 %v1543
    %v1687 = vpop.f32.mrb[0].mxu0
    %v1688 = vadd.f32 0.0, %v1687
    %v1689 = vpop.f32.mrb[0].mxu0
    %v1690 = vpop.f32.mrb[0].mxu0
    %v1691 = vpop.f32.mrb[0].mxu0
    %1692 = vdwg.mxu0
    %v1693 = vadd.f32 %v444, %v1688
    %v1694 = vtanh.pop %v1693
    %v1695 = vmul.f32 %v1694, 0.5
    %v1696 = vadd.f32 %v1695, 0.5
    %v1697 = vmul.f32 %v1696, %v1531
    %1699 = vrot.lane.b32.xlu0 %v1694, 64
    %v1700 = vpop.permute.xlu0 %1699
    %v1702 = vmul.f32 %v1696, %v1700
    %1704 = vrot.lane.b32.xlu0 %v1702, 32
    %v1705 = vpop.permute.xlu0 %1704
    %v1707 = vadd.f32 %v1697, %v1705
    %v1708 = vtanh.pop %v1707
    %1710 = vrot.lane.b32.xlu0 %v1708, 64
    %v1711 = vpop.permute.xlu0 %1710
    %v1713 = vmul.f32 %v1696, %v1711
    %v1714 = vpack.c.bf16 %v1713, %v1713
    %1716 = vrot.lane.b32.xlu0 %v1714, 32
    %v1717 = vpop.permute.xlu0 %1716
    %v1719 = vsel %vm461, %v1717, 0
    %1721 = vmatprep.subr.bf16.mxu0 0
    %1722 = vmatpush1.bf16.msra.mxu0 %v544
    %1723 = vmatprep.subr.bf16.mxu0 0
    %1724 = vmatpush1.bf16.msra.mxu0 %v545
    %1725 = vmatprep.subr.bf16.mxu0 0
    %1726 = vmatpush1.bf16.msra.mxu0 0
    %1727 = vmatprep.subr.bf16.mxu0 0
    %1728 = vmatpush1.bf16.msra.mxu0 0
    %1729 = vmatprep.subr.bf16.mxu0 0
    %1730 = vmatpush1.bf16.msra.mxu0 0
    %1731 = vmatprep.subr.bf16.mxu0 0
    %1732 = vmatpush1.bf16.msra.mxu0 0
    %1733 = vmatprep.subr.bf16.mxu0 0
    %1734 = vmatpush1.bf16.msra.mxu0 0
    %1735 = vmatprep.subr.bf16.mxu0 0
    %1736 = vmatpush1.bf16.msra.mxu0 0
    %1737 = vmatprep.subr.bf16.mxu0 0
    %1738 = vmatpush1.bf16.msra.mxu0 0
    %1739 = vmatprep.subr.bf16.mxu0 0
    %1740 = vmatpush1.bf16.msra.mxu0 0
    %1741 = vmatprep.subr.bf16.mxu0 0
    %1742 = vmatpush1.bf16.msra.mxu0 0
    %1743 = vmatprep.subr.bf16.mxu0 0
    %1744 = vmatpush1.bf16.msra.mxu0 0
    %1745 = vmatprep.subr.bf16.mxu0 0
    %1746 = vmatpush1.bf16.msra.mxu0 0
    %1747 = vmatprep.subr.bf16.mxu0 0
    %1748 = vmatpush1.bf16.msra.mxu0 0
    %1749 = vmatprep.subr.bf16.mxu0 0
    %1750 = vmatpush1.bf16.msra.mxu0 0
    %1751 = vmatprep.subr.bf16.mxu0 0
    %1752 = vmatpush1.bf16.msra.mxu0 0
    %1753 = vmatprep.mubr.bf16.mxu0 0
    %1754 = vmatmul.mubr.bf16.gmra.mrb[0].mxu0 %v1719
    %v1755 = vpop.f32.mrb[0].mxu0
    %v1756 = vadd.f32 %v531, %v1755
    %v1757 = vpop.f32.mrb[0].mxu0
    %v1758 = vpop.f32.mrb[0].mxu0
    %v1759 = vpop.f32.mrb[0].mxu0
    %1760 = vdwg.mxu0
    %1762 = vrot.lane.b32.xlu0 %v1652, 32
    %v1763 = vpop.permute.xlu0 %1762
    %v1765 = vsel %vm461, %v1763, 0
    %1767 = vmatprep.subr.bf16.mxu0 0
    %1768 = vmatpush1.bf16.msra.mxu0 %v707
    %1769 = vmatprep.subr.bf16.mxu0 0
    %1770 = vmatpush1.bf16.msra.mxu0 %v708
    %1771 = vmatprep.subr.bf16.mxu0 0
    %1772 = vmatpush1.bf16.msra.mxu0 0
    %1773 = vmatprep.subr.bf16.mxu0 0
    %1774 = vmatpush1.bf16.msra.mxu0 0
    %1775 = vmatprep.subr.bf16.mxu0 0
    %1776 = vmatpush1.bf16.msra.mxu0 0
    %1777 = vmatprep.subr.bf16.mxu0 0
    %1778 = vmatpush1.bf16.msra.mxu0 0
    %1779 = vmatprep.subr.bf16.mxu0 0
    %1780 = vmatpush1.bf16.msra.mxu0 0
    %1781 = vmatprep.subr.bf16.mxu0 0
    %1782 = vmatpush1.bf16.msra.mxu0 0
    %1783 = vmatprep.subr.bf16.mxu0 0
    %1784 = vmatpush1.bf16.msra.mxu0 0
    %1785 = vmatprep.subr.bf16.mxu0 0
    %1786 = vmatpush1.bf16.msra.mxu0 0
    %1787 = vmatprep.subr.bf16.mxu0 0
    %1788 = vmatpush1.bf16.msra.mxu0 0
    %1789 = vmatprep.subr.bf16.mxu0 0
    %1790 = vmatpush1.bf16.msra.mxu0 0
    %1791 = vmatprep.subr.bf16.mxu0 0
    %1792 = vmatpush1.bf16.msra.mxu0 0
    %1793 = vmatprep.subr.bf16.mxu0 0
    %1794 = vmatpush1.bf16.msra.mxu0 0
    %1795 = vmatprep.subr.bf16.mxu0 0
    %1796 = vmatpush1.bf16.msra.mxu0 0
    %1797 = vmatprep.subr.bf16.mxu0 0
    %1798 = vmatpush1.bf16.msra.mxu0 0
    %1799 = vmatprep.mubr.bf16.mxu0 0
    %1800 = vmatmul.mubr.bf16.gmra.mrb[0].mxu0 %v1765
    %v1801 = vpop.f32.mrb[0].mxu0
    %v1802 = vadd.f32 0.0, %v1801
    %v1803 = vpop.f32.mrb[0].mxu0
    %v1804 = vpop.f32.mrb[0].mxu0
    %v1805 = vpop.f32.mrb[0].mxu0
    %1806 = vdwg.mxu0
    %v1807 = vadd.f32 %v1580, %v1802
    %v1808 = vtanh.pop %v1807
    %v1809 = vmul.f32 %v1808, 0.5
    %v1810 = vadd.f32 %v1809, 0.5
    %v1811 = vmul.f32 %v1810, %v1645
    %1813 = vrot.lane.b32.xlu0 %v1808, 64
    %v1814 = vpop.permute.xlu0 %1813
    %v1816 = vmul.f32 %v1810, %v1814
    %1818 = vrot.lane.b32.xlu0 %v1816, 32
    %v1819 = vpop.permute.xlu0 %1818
    %v1821 = vadd.f32 %v1811, %v1819
    %v1822 = vtanh.pop %v1821
    %1824 = vrot.lane.b32.xlu0 %v1822, 64
    %v1825 = vpop.permute.xlu0 %1824
    %v1827 = vmul.f32 %v1810, %v1825
    %v1828 = vpack.c.bf16 %v1827, %v1827
    %1830 = vrot.lane.b32.xlu0 %v1828, 32
    %v1831 = vpop.permute.xlu0 %1830
    %v1833 = vsel %vm461, %v1831, 0
    %1835 = vmatprep.subr.bf16.mxu0 0
    %1836 = vmatpush1.bf16.msra.mxu0 %v707
    %1837 = vmatprep.subr.bf16.mxu0 0
    %1838 = vmatpush1.bf16.msra.mxu0 %v708
    %1839 = vmatprep.subr.bf16.mxu0 0
    %1840 = vmatpush1.bf16.msra.mxu0 0
    %1841 = vmatprep.subr.bf16.mxu0 0
    %1842 = vmatpush1.bf16.msra.mxu0 0
    %1843 = vmatprep.subr.bf16.mxu0 0
    %1844 = vmatpush1.bf16.msra.mxu0 0
    %1845 = vmatprep.subr.bf16.mxu0 0
    %1846 = vmatpush1.bf16.msra.mxu0 0
    %1847 = vmatprep.subr.bf16.mxu0 0
    %1848 = vmatpush1.bf16.msra.mxu0 0
    %1849 = vmatprep.subr.bf16.mxu0 0
    %1850 = vmatpush1.bf16.msra.mxu0 0
    %1851 = vmatprep.subr.bf16.mxu0 0
    %1852 = vmatpush1.bf16.msra.mxu0 0
    %1853 = vmatprep.subr.bf16.mxu0 0
    %1854 = vmatpush1.bf16.msra.mxu0 0
    %1855 = vmatprep.subr.bf16.mxu0 0
    %1856 = vmatpush1.bf16.msra.mxu0 0
    %1857 = vmatprep.subr.bf16.mxu0 0
    %1858 = vmatpush1.bf16.msra.mxu0 0
    %1859 = vmatprep.subr.bf16.mxu0 0
    %1860 = vmatpush1.bf16.msra.mxu0 0
    %1861 = vmatprep.subr.bf16.mxu0 0
    %1862 = vmatpush1.bf16.msra.mxu0 0
    %1863 = vmatprep.subr.bf16.mxu0 0
    %1864 = vmatpush1.bf16.msra.mxu0 0
    %1865 = vmatprep.subr.bf16.mxu0 0
    %1866 = vmatpush1.bf16.msra.mxu0 0
    %1867 = vmatprep.mubr.bf16.mxu0 0
    %1868 = vmatmul.mubr.bf16.gmra.mrb[0].mxu0 %v1833
    %v1869 = vpop.f32.mrb[0].mxu0
    %v1870 = vadd.f32 0.0, %v1869
    %v1871 = vpop.f32.mrb[0].mxu0
    %v1872 = vpop.f32.mrb[0].mxu0
    %v1873 = vpop.f32.mrb[0].mxu0
    %1874 = vdwg.mxu0
    %v1875 = vadd.f32 %v1756, %v1870
    %v1876 = vtanh.pop %v1875
    %v1877 = vmul.f32 %v1876, 0.5
    %v1878 = vadd.f32 %v1877, 0.5
    %v1879 = vmul.f32 %v1878, %v1821
    %1881 = vrot.lane.b32.xlu0 %v1876, 64
    %v1882 = vpop.permute.xlu0 %1881
    %v1884 = vmul.f32 %v1878, %v1882
    %1886 = vrot.lane.b32.xlu0 %v1884, 32
    %v1887 = vpop.permute.xlu0 %1886
    %v1889 = vadd.f32 %v1879, %v1887
    %v1890 = vtanh.pop %v1889
    %1892 = vrot.lane.b32.xlu0 %v1890, 64
    %v1893 = vpop.permute.xlu0 %1892
    %v1895 = vmul.f32 %v1878, %v1893
    %v1896 = vld [vmem:[#allocation4] sm:$0x1]
    %v1898 = vlaneseq
    %v1899 = vshrl.u32 %v1898, 7
    %v1900 = vsub.s32 0, %v1899
    %v1901 = vrot.slane %v1896, %v1900
    %1902 = vrot.lane.b32.xlu0 %v1901, 96
    %v1903 = vpop.permute.xlu0 %1902
    %v1905 = vmul.f32 %v1895, %v1903
    %1907 = vrot.lane.b32.xlu0 %v1905, 32
    %v1908 = vpop.permute.xlu0 %1907
    %vm1910 = vcmask 254976
    %v1911 = vsel %vm1910, %v1908, 0.0
    %1912 = vadd.xlane.f32.xlu0 %v1911
    %v1913 = vpop.xlane.xlu0 %1912
    %vm1914 = vcmask 1024
    %1915 = vst.msk [vmem:[%s8] sm:$0x3] %vm1914, %v1913
    // Predicated region
    $region42: #{model_forward.1} parent=1 // pred_check
      _
    $region43: #{model_forward.1} parent=1 // pred_check_branch
      %1917 = sbr.rel (0) target = $region45
    $region44: #{model_forward.1} parent=1 // pred_region
      _
    $region45: #{model_forward.1} parent=1 // pred_fallthru
      _
    // Predicated region
    $region46: #{model_forward.1} parent=1 // pred_check
      _
    $region47: #{model_forward.1} parent=1 // pred_check_branch
      %1919 = sbr.rel (0) target = $region49
    $region48: #{model_forward.1} parent=1 // pred_region
      _
    $region49: #{model_forward.1} parent=1 // pred_fallthru
      _
    %1920 = vsyncpa [#allocation3], 1
    %1921 = vsyncpa [#allocation5], 1

</llo_original>
